<compile_context>
chip_gen: v6e
topology: v6e:2x2x1
jax: 0.10.0
libtpu: 0.0.40
codegen_flags: <defaults>
</compile_context>

<pallas_src>
import math
import functools

import jax
import jax.numpy as jnp
from jax import lax
from jax.experimental import pallas as pl
from jax.experimental.pallas import tpu as pltpu


def _attn_kernel(x_ref, wqkv_ref, bqkv_ref, wp_ref, bp_ref, out_ref,
                 *, num_heads, head_dim, head_dim_padded):
    Bb, T, Cp = x_ref.shape
    H, Dp = num_heads, head_dim_padded
    scale = 1.0 / math.sqrt(head_dim)          # scale uses the ORIGINAL head dim
    w_dtype = wqkv_ref.dtype

    # ---- fused QKV projection: one lane-dense MXU matmul (M = Bb*T, N = 3*Cp) ----
    x2 = x_ref[...].reshape(Bb * T, Cp).astype(w_dtype)
    qkv = jnp.dot(x2, wqkv_ref[...], preferred_element_type=jnp.float32)
    qkv = qkv + bqkv_ref[...]                  # (Bb*T, 3*Cp), f32

    # 128-lane-aligned slices (Cp is a multiple of 128): no lane relayout.
    q = qkv[:, :Cp].reshape(Bb, T, Cp)
    k = qkv[:, Cp:2 * Cp].reshape(Bb, T, Cp)
    v = qkv[:, 2 * Cp:].reshape(Bb, T, Cp)
    q_c = q.astype(w_dtype)                    # cast once at the MXU boundary

    # Causal mask (finite large-negative is padding-safe) and per-lane head ids.
    row = lax.broadcasted_iota(jnp.int32, (1, T, T), 1)
    col = lax.broadcasted_iota(jnp.int32, (1, T, T), 2)
    causal = col <= row                        # (1, T, T), broadcasts over batch
    lane = lax.broadcasted_iota(jnp.int32, (1, 1, Cp), 2)

    # ---- per-head attention with lane-masked, lane-dense accumulation ----
    # Heads occupy disjoint Dp-lane groups of the Cp lanes.  Masking K to a head's
    # lane group makes the full-width contraction equal the per-head contraction,
    # and att @ V_masked lands the head result directly in its lane slot of the
    # (Bb, T, Cp) accumulator: no sub-vreg scatter, no scratch, no extra VMEM
    # round-trip before the output projection.
    y_acc = jnp.zeros((Bb, T, Cp), jnp.float32)
    for h in range(H):
        sel = (lane >= h * Dp) & (lane < (h + 1) * Dp)        # (1, 1, Cp)
        k_h = jnp.where(sel, k, 0.0).astype(w_dtype)
        v_h = jnp.where(sel, v, 0.0).astype(w_dtype)

        # (Bb, T, T) = einsum('btc,bsc->bts'): K consumed un-transposed.
        s = lax.dot_general(q_c, k_h,
                            dimension_numbers=(((2,), (2,)), ((0,), (0,))),
                            preferred_element_type=jnp.float32) * scale
        s = jnp.where(causal, s, -1e30)

        # Numerically-stable softmax in f32; reciprocal runs on the EUP slot.
        s = s - jnp.max(s, axis=-1, keepdims=True)
        p = jnp.exp(s)
        att = p * pl.reciprocal(jnp.sum(p, axis=-1, keepdims=True), approx=True)

        # (Bb, T, Cp) = einsum('bts,bsc->btc'); nonzero only in head-h lanes.
        y_acc = y_acc + lax.dot_general(att.astype(w_dtype), v_h,
                                        dimension_numbers=(((2,), (1,)), ((0,), (0,))),
                                        preferred_element_type=jnp.float32)

    # ---- output projection: one big matmul; Cp-wide (lane-dense) store ----
    y2 = y_acc.reshape(Bb * T, Cp).astype(w_dtype)
    out = jnp.dot(y2, wp_ref[...], preferred_element_type=jnp.float32) + bp_ref[...]
    out_ref[...] = out.reshape(Bb, T, Cp).astype(out_ref.dtype)


def _pack_params(params, num_heads, C, Cp, Dp, param_dtype):
    """Head-pad (D -> Dp) and fuse QKV weights host-side. Weights are (in, out)."""
    H, D = num_heads, C // num_heads

    def pad_w_heads(w):                        # (C, C) -> (Cp, Cp)
        w = w.reshape(C, H, D)
        w = jnp.pad(w, ((0, Cp - C), (0, 0), (0, Dp - D)))
        return w.reshape(Cp, H * Dp)

    def pad_b_heads(b):                        # (1, C) -> (1, Cp)
        b = b.reshape(1, H, D)
        b = jnp.pad(b, ((0, 0), (0, 0), (0, Dp - D)))
        return b.reshape(1, H * Dp)

    wqkv = jnp.concatenate([pad_w_heads(params["wq"]),
                            pad_w_heads(params["wk"]),
                            pad_w_heads(params["wv"])], axis=1)   # (Cp, 3*Cp)
    bqkv = jnp.concatenate([pad_b_heads(params["bq"]),
                            pad_b_heads(params["bk"]),
                            pad_b_heads(params["bv"])], axis=1)   # (1, 3*Cp)

    wp = params["wp"].reshape(H, D, C)
    wp = jnp.pad(wp, ((0, 0), (0, Dp - D), (0, Cp - C))).reshape(Cp, Cp)
    bp = jnp.pad(params["bp"], ((0, 0), (0, Cp - C)))

    return (wqkv.astype(param_dtype), bqkv.astype(jnp.float32),
            wp.astype(param_dtype), bp.astype(jnp.float32))


def _tpu_budget():
    """(vmem_capacity_bytes, num_tensorcores_per_chip) with conservative fallbacks."""
    vmem_bytes = 64 << 20       # conservative: v7x physical per-TC VMEM
    num_tc = 1                  # v5e/v6e: 1 TensorCore per chip
    try:
        info = pltpu.get_tpu_info()
        vmem_bytes = int(getattr(info, "vmem_capacity_bytes", vmem_bytes))
        ver = (str(getattr(info, "chip_version", "")) + " "
               + str(getattr(info, "name", ""))).lower()
        if any(tag in ver for tag in ("v7", "tpu7", "7x")):
            num_tc = 2          # v7x: 2 TensorCores per chip
    except Exception:
        pass
    return vmem_bytes, num_tc


def causal_self_attention(x, params, num_heads, *, param_dtype=jnp.bfloat16):
    """x: (B, T, C) float32. params: dict of (C,C) weights (in,out) and (1,C) biases.

    Eval-mode forward of CausalSelfAttention (attn_drop / resid_drop are identity).
    """
    B, T, C = x.shape
    assert C % num_heads == 0
    D = C // num_heads

    # Padded hidden size: multiple of 128 (lane-dense) and divisible by num_heads.
    Cp = pl.cdiv(C, 128) * 128
    while Cp % num_heads:
        Cp += 128
    Dp = Cp // num_heads

    wqkv, bqkv, wp, bp = _pack_params(params, num_heads, C, Cp, Dp, param_dtype)
    xp = jnp.pad(x, ((0, 0), (0, 0), (0, Cp - C)))

    vmem_bytes, num_tc = _tpu_budget()
    w_itemsize = jnp.dtype(param_dtype).itemsize

    # Resident weights (Pallas double-buffers inputs) + per-batch-row cost of the
    # x/out blocks (double-buffered) and in-kernel f32 temporaries.
    weight_bytes = 2 * ((Cp * 3 * Cp + Cp * Cp) * w_itemsize + (3 * Cp + Cp) * 4)
    per_row = 4 * T * (4 * Cp      # x + out blocks, double-buffered
                       + 3 * Cp    # qkv (f32)
                       + 3 * Cp    # q / k / v views
                       + 3 * Cp    # masked k/v + y_acc
                       + 4 * T)    # score / softmax temporaries

    budget = int(vmem_bytes * 0.8)
    max_bb = max(1, (budget - weight_bytes) // per_row)

    # Fold as much batch into one block as VMEM allows (fills the MXU M dim and
    # amortizes per-step pipeline overhead).  Only split across grid steps when
    # there is more than one TensorCore to feed (v7x).
    block_b = int(min(B, max_bb))
    if num_tc > 1 and B > 1:
        block_b = max(1, min(block_b, pl.cdiv(B, num_tc)))
    nb = pl.cdiv(B, block_b)
    # TODO(synk): when B == 1 on a 2-TC chip, add a second "parallel" grid axis
    #             over query-row tiles so both TensorCores get work.

    vmem_limit = int(min(vmem_bytes * 0.9,
                         max(weight_bytes + 2 * block_b * per_row, 32 << 20)))

    kernel = functools.partial(_attn_kernel, num_heads=num_heads,
                               head_dim=D, head_dim_padded=Dp)

    x_spec = pl.BlockSpec((block_b, T, Cp), lambda b: (b, 0, 0))
    out_spec = pl.BlockSpec((block_b, T, Cp), lambda b: (b, 0, 0))
    wqkv_spec = pl.BlockSpec((Cp, 3 * Cp), lambda b: (0, 0))
    bqkv_spec = pl.BlockSpec((1, 3 * Cp), lambda b: (0, 0))
    wp_spec = pl.BlockSpec((Cp, Cp), lambda b: (0, 0))
    bp_spec = pl.BlockSpec((1, Cp), lambda b: (0, 0))
    # TODO(synk): for hidden sizes >= ~1K on v7x (64 MiB VMEM), tile wqkv along its
    #             3*Cp output dim with an extra "arbitrary" grid axis and force
    #             single-buffering of the constant-index weight blocks.

    # Cost estimate uses the REAL (unpadded) sizes.
    flops = (2 * B * T * C * 3 * C                 # fused QKV projection
             + 4 * B * num_heads * T * T * D       # QK^T + att @ V
             + 2 * B * T * C * C)                  # output projection
    bytes_accessed = (4 * (2 * B * T * C)
                      + w_itemsize * (3 * C * C + C * C)
                      + 4 * (3 * C + C))
    cost = pl.CostEstimate(flops=int(flops),
                           transcendentals=int(B * num_heads * T * T),
                           bytes_accessed=int(bytes_accessed))

    out_padded = pl.pallas_call(
        kernel,
        out_shape=jax.ShapeDtypeStruct((B, T, Cp), x.dtype),
        grid_spec=pltpu.PrefetchScalarGridSpec(
            num_scalar_prefetch=0,
            grid=(nb,),
            in_specs=[x_spec, wqkv_spec, bqkv_spec, wp_spec, bp_spec],
            out_specs=out_spec),
        compiler_params=pltpu.CompilerParams(
            dimension_semantics=("parallel",),
            vmem_limit_bytes=vmem_limit),
        cost_estimate=cost,
    )(xp, wqkv, bqkv, wp, bp)

    return out_padded[..., :C]


def _reference(x, params, num_heads):
    """Pure-JAX reference mirroring the PyTorch forward (eval mode)."""
    B, T, C = x.shape
    D = C // num_heads

    def lin(t, w, b):
        return t @ w + b  # w already (in, out)

    def split_heads(t):  # (B,T,C) -> (B,H,T,D)
        return t.reshape(B, T, num_heads, D).transpose(0, 2, 1, 3)

    q = split_heads(lin(x, params["wq"], params["bq"]))
    k = split_heads(lin(x, params["wk"], params["bk"]))
    v = split_heads(lin(x, params["wv"], params["bv"]))

    att = (q @ jnp.swapaxes(k, -2, -1)) * (1.0 / math.sqrt(D))
    mask = jnp.tril(jnp.ones((T, T)))[None, None]
    att = jnp.where(mask == 0, -jnp.inf, att)
    att = jax.nn.softmax(att, axis=-1)
    y = att @ v
    y = y.transpose(0, 2, 1, 3).reshape(B, T, C)
    return lin(y, params["wp"], params["bp"])


if __name__ == "__main__":
    # cfg: dim_hidden=32, num_heads=4, length_eq >= T, dropouts=0 (eval)
    B, T, C, H = 2, 8, 32, 4

    key = jax.random.PRNGKey(0)
    keys = jax.random.split(key, 9)
    bound = 1.0 / math.sqrt(C)

    def w(k):  # (in, out), uniform(-1/sqrt(fan_in), 1/sqrt(fan_in)) like nn.Linear
        return jax.random.uniform(k, (C, C), jnp.float32, -bound, bound)

    def b(k):
        return jax.random.uniform(k, (1, C), jnp.float32, -bound, bound)

    params = {
        "wq": w(keys[0]), "bq": b(keys[1]),
        "wk": w(keys[2]), "bk": b(keys[3]),
        "wv": w(keys[4]), "bv": b(keys[5]),
        "wp": w(keys[6]), "bp": b(keys[7]),
    }
    x = jax.random.normal(keys[8], (B, T, C), jnp.float32)

    ref = _reference(x, params, H)

    # f32 weights: tight check (only error source is the EUP approx reciprocal).
    out_f32 = jax.block_until_ready(
        causal_self_attention(x, params, H, param_dtype=jnp.float32))
    assert out_f32.shape == (B, T, C)
    assert jnp.allclose(out_f32, ref, atol=2e-3, rtol=2e-3), "f32 mismatch vs reference"

    # Default path (bf16 weights, MXU-boundary casts): looser check.
    out_bf16 = jax.block_until_ready(causal_self_attention(x, params, H))
    assert out_bf16.shape == (B, T, C)
    assert jnp.allclose(out_bf16, ref, atol=5e-2, rtol=5e-2), "bf16 mismatch vs reference"

    print("KERNEL_OK")
</pallas_src>

<mosaic_0001>
module attributes {stable_mosaic.version = 11 : i64} {
  func.func @_attn_kernel(%arg0: i32, %arg1: memref<2x8x128xf32, #tpu.memory_space<vmem>>, %arg2: memref<128x384xf32, #tpu.memory_space<vmem>>, %arg3: memref<1x384xf32, #tpu.memory_space<vmem>>, %arg4: memref<128x128xf32, #tpu.memory_space<vmem>>, %arg5: memref<1x128xf32, #tpu.memory_space<vmem>>, %arg6: memref<2x8x128xf32, #tpu.memory_space<vmem>>) attributes {dimension_semantics = [#tpu.dimension_semantics<parallel>], iteration_bounds = array<i64: 1>, scalar_prefetch = 0 : i64, scratch_operands = 0 : i64, tpu.core_type = #tpu.core_type<tc>, window_params = [{transform_indices = @transform_0, window_bounds = array<i64: 2, 8, 128>}, {pipeline_mode = #tpu.pipeline_mode<synchronous>, transform_indices = @transform_1, window_bounds = array<i64: 128, 384>}, {pipeline_mode = #tpu.pipeline_mode<synchronous>, transform_indices = @transform_2, window_bounds = array<i64: 1, 384>}, {pipeline_mode = #tpu.pipeline_mode<synchronous>, transform_indices = @transform_3, window_bounds = array<i64: 128, 128>}, {pipeline_mode = #tpu.pipeline_mode<synchronous>, transform_indices = @transform_4, window_bounds = array<i64: 1, 128>}, {transform_indices = @transform_5, window_bounds = array<i64: 2, 8, 128>}]} {
    %c0 = arith.constant 0 : index
    %c0_0 = arith.constant 0 : index
    %c0_1 = arith.constant 0 : index
    %0 = vector.load %arg1[%c0, %c0_0, %c0_1] : memref<2x8x128xf32, #tpu.memory_space<vmem>>, vector<2x8x128xf32>
    %1 = vector.shape_cast %0 : vector<2x8x128xf32> to vector<16x128xf32>
    %c0_2 = arith.constant 0 : index
    %c0_3 = arith.constant 0 : index
    %2 = vector.load %arg2[%c0_2, %c0_3] : memref<128x384xf32, #tpu.memory_space<vmem>>, vector<128x384xf32>
    %cst = arith.constant dense<0.000000e+00> : vector<16x384xf32>
    %3 = tpu.matmul %1, %2, %cst {dimension_numbers = #tpu.dot_dimension_numbers<[1], [0], [0], [1], [0, 0, 1, 1], [], []>} : vector<16x128xf32>, vector<128x384xf32>, vector<16x384xf32> -> vector<16x384xf32>
    %c0_4 = arith.constant 0 : index
    %c0_5 = arith.constant 0 : index
    %4 = vector.load %arg3[%c0_4, %c0_5] : memref<1x384xf32, #tpu.memory_space<vmem>>, vector<1x384xf32>
    %5 = vector.broadcast %4 : vector<1x384xf32> to vector<16x384xf32>
    %6 = arith.addf %3, %5 : vector<16x384xf32>
    %7 = vector.extract_strided_slice %6 {offsets = [0, 0], sizes = [16, 128], strides = [1, 1]} : vector<16x384xf32> to vector<16x128xf32>
    %8 = vector.shape_cast %7 : vector<16x128xf32> to vector<2x8x128xf32>
    %9 = vector.extract_strided_slice %6 {offsets = [0, 128], sizes = [16, 128], strides = [1, 1]} : vector<16x384xf32> to vector<16x128xf32>
    %10 = vector.shape_cast %9 : vector<16x128xf32> to vector<2x8x128xf32>
    %11 = vector.extract_strided_slice %6 {offsets = [0, 256], sizes = [16, 128], strides = [1, 1]} : vector<16x384xf32> to vector<16x128xf32>
    %12 = vector.shape_cast %11 : vector<16x128xf32> to vector<2x8x128xf32>
    %13 = tpu.iota {dimensions = array<i32: 1>} : vector<1x8x8xi32>
    %14 = tpu.iota {dimensions = array<i32: 2>} : vector<1x8x8xi32>
    %15 = arith.cmpi sle, %14, %13 : vector<1x8x8xi32>
    %16 = tpu.iota {dimensions = array<i32: 2>} : vector<1x1x128xi32>
    %cst_6 = arith.constant 0.000000e+00 : f32
    %17 = vector.broadcast %cst_6 : f32 to vector<2x8x128xf32>
    %c0_i32 = arith.constant 0 : i32
    %18 = vector.broadcast %c0_i32 : i32 to vector<1x1x128xi32>
    %19 = arith.cmpi sge, %16, %18 : vector<1x1x128xi32>
    %c32_i32 = arith.constant 32 : i32
    %20 = vector.broadcast %c32_i32 : i32 to vector<1x1x128xi32>
    %21 = arith.cmpi slt, %16, %20 : vector<1x1x128xi32>
    %22 = arith.andi %19, %21 : vector<1x1x128xi1>
    %cst_7 = arith.constant 0.000000e+00 : f32
    %23 = vector.shape_cast %22 : vector<1x1x128xi1> to vector<1x1x128xi1>
    %24 = vector.broadcast %23 : vector<1x1x128xi1> to vector<2x8x128xi1>
    %25 = vector.broadcast %cst_7 : f32 to vector<2x8x128xf32>
    %26 = arith.select %24, %10, %25 : vector<2x8x128xi1>, vector<2x8x128xf32>
    %cst_8 = arith.constant 0.000000e+00 : f32
    %27 = vector.shape_cast %22 : vector<1x1x128xi1> to vector<1x1x128xi1>
    %28 = vector.broadcast %27 : vector<1x1x128xi1> to vector<2x8x128xi1>
    %29 = vector.broadcast %cst_8 : f32 to vector<2x8x128xf32>
    %30 = arith.select %28, %12, %29 : vector<2x8x128xi1>, vector<2x8x128xf32>
    %cst_9 = arith.constant dense<0.000000e+00> : vector<2x8x8xf32>
    %31 = tpu.matmul %8, %26, %cst_9 {dimension_numbers = #tpu.dot_dimension_numbers<[2], [2], [1], [1], [0, 0, 0, 1, 1, 1], [0], [0]>} : vector<2x8x128xf32>, vector<2x8x128xf32>, vector<2x8x8xf32> -> vector<2x8x8xf32>
    %cst_10 = arith.constant 0.353553385 : f32
    %32 = vector.broadcast %cst_10 : f32 to vector<2x8x8xf32>
    %33 = arith.mulf %31, %32 : vector<2x8x8xf32>
    %cst_11 = arith.constant -1.000000e+30 : f32
    %34 = vector.shape_cast %15 : vector<1x8x8xi1> to vector<1x8x8xi1>
    %35 = vector.broadcast %34 : vector<1x8x8xi1> to vector<2x8x8xi1>
    %36 = vector.broadcast %cst_11 : f32 to vector<2x8x8xf32>
    %37 = arith.select %35, %33, %36 : vector<2x8x8xi1>, vector<2x8x8xf32>
    %cst_12 = arith.constant dense<0xFF800000> : vector<2x8xf32>
    %38 = vector.multi_reduction <maximumf>, %37, %cst_12 [2] : vector<2x8x8xf32> to vector<2x8xf32>
    %39 = vector.shape_cast %38 : vector<2x8xf32> to vector<2x8x1xf32>
    %40 = vector.broadcast %39 : vector<2x8x1xf32> to vector<2x8x8xf32>
    %41 = arith.subf %37, %40 : vector<2x8x8xf32>
    %42 = math.exp %41 : vector<2x8x8xf32>
    %cst_13 = arith.constant dense<0.000000e+00> : vector<2x8xf32>
    %43 = vector.multi_reduction <add>, %42, %cst_13 [2] : vector<2x8x8xf32> to vector<2x8xf32>
    %44 = vector.shape_cast %43 : vector<2x8xf32> to vector<2x8x1xf32>
    %45 = tpu.reciprocal %44 {approx = true} : vector<2x8x1xf32> -> vector<2x8x1xf32>
    %46 = vector.broadcast %45 : vector<2x8x1xf32> to vector<2x8x8xf32>
    %47 = arith.mulf %42, %46 : vector<2x8x8xf32>
    %cst_14 = arith.constant dense<0.000000e+00> : vector<2x8x128xf32>
    %48 = tpu.matmul %47, %30, %cst_14 {dimension_numbers = #tpu.dot_dimension_numbers<[2], [1], [1], [2], [0, 0, 0, 1, 1, 2], [0], [0]>} : vector<2x8x8xf32>, vector<2x8x128xf32>, vector<2x8x128xf32> -> vector<2x8x128xf32>
    %49 = arith.addf %17, %48 : vector<2x8x128xf32>
    %c32_i32_15 = arith.constant 32 : i32
    %50 = vector.broadcast %c32_i32_15 : i32 to vector<1x1x128xi32>
    %51 = arith.cmpi sge, %16, %50 : vector<1x1x128xi32>
    %c64_i32 = arith.constant 64 : i32
    %52 = vector.broadcast %c64_i32 : i32 to vector<1x1x128xi32>
    %53 = arith.cmpi slt, %16, %52 : vector<1x1x128xi32>
    %54 = arith.andi %51, %53 : vector<1x1x128xi1>
    %cst_16 = arith.constant 0.000000e+00 : f32
    %55 = vector.shape_cast %54 : vector<1x1x128xi1> to vector<1x1x128xi1>
    %56 = vector.broadcast %55 : vector<1x1x128xi1> to vector<2x8x128xi1>
    %57 = vector.broadcast %cst_16 : f32 to vector<2x8x128xf32>
    %58 = arith.select %56, %10, %57 : vector<2x8x128xi1>, vector<2x8x128xf32>
    %cst_17 = arith.constant 0.000000e+00 : f32
    %59 = vector.shape_cast %54 : vector<1x1x128xi1> to vector<1x1x128xi1>
    %60 = vector.broadcast %59 : vector<1x1x128xi1> to vector<2x8x128xi1>
    %61 = vector.broadcast %cst_17 : f32 to vector<2x8x128xf32>
    %62 = arith.select %60, %12, %61 : vector<2x8x128xi1>, vector<2x8x128xf32>
    %cst_18 = arith.constant dense<0.000000e+00> : vector<2x8x8xf32>
    %63 = tpu.matmul %8, %58, %cst_18 {dimension_numbers = #tpu.dot_dimension_numbers<[2], [2], [1], [1], [0, 0, 0, 1, 1, 1], [0], [0]>} : vector<2x8x128xf32>, vector<2x8x128xf32>, vector<2x8x8xf32> -> vector<2x8x8xf32>
    %cst_19 = arith.constant 0.353553385 : f32
    %64 = vector.broadcast %cst_19 : f32 to vector<2x8x8xf32>
    %65 = arith.mulf %63, %64 : vector<2x8x8xf32>
    %cst_20 = arith.constant -1.000000e+30 : f32
    %66 = vector.shape_cast %15 : vector<1x8x8xi1> to vector<1x8x8xi1>
    %67 = vector.broadcast %66 : vector<1x8x8xi1> to vector<2x8x8xi1>
    %68 = vector.broadcast %cst_20 : f32 to vector<2x8x8xf32>
    %69 = arith.select %67, %65, %68 : vector<2x8x8xi1>, vector<2x8x8xf32>
    %cst_21 = arith.constant dense<0xFF800000> : vector<2x8xf32>
    %70 = vector.multi_reduction <maximumf>, %69, %cst_21 [2] : vector<2x8x8xf32> to vector<2x8xf32>
    %71 = vector.shape_cast %70 : vector<2x8xf32> to vector<2x8x1xf32>
    %72 = vector.broadcast %71 : vector<2x8x1xf32> to vector<2x8x8xf32>
    %73 = arith.subf %69, %72 : vector<2x8x8xf32>
    %74 = math.exp %73 : vector<2x8x8xf32>
    %cst_22 = arith.constant dense<0.000000e+00> : vector<2x8xf32>
    %75 = vector.multi_reduction <add>, %74, %cst_22 [2] : vector<2x8x8xf32> to vector<2x8xf32>
    %76 = vector.shape_cast %75 : vector<2x8xf32> to vector<2x8x1xf32>
    %77 = tpu.reciprocal %76 {approx = true} : vector<2x8x1xf32> -> vector<2x8x1xf32>
    %78 = vector.broadcast %77 : vector<2x8x1xf32> to vector<2x8x8xf32>
    %79 = arith.mulf %74, %78 : vector<2x8x8xf32>
    %cst_23 = arith.constant dense<0.000000e+00> : vector<2x8x128xf32>
    %80 = tpu.matmul %79, %62, %cst_23 {dimension_numbers = #tpu.dot_dimension_numbers<[2], [1], [1], [2], [0, 0, 0, 1, 1, 2], [0], [0]>} : vector<2x8x8xf32>, vector<2x8x128xf32>, vector<2x8x128xf32> -> vector<2x8x128xf32>
    %81 = arith.addf %49, %80 : vector<2x8x128xf32>
    %c64_i32_24 = arith.constant 64 : i32
    %82 = vector.broadcast %c64_i32_24 : i32 to vector<1x1x128xi32>
    %83 = arith.cmpi sge, %16, %82 : vector<1x1x128xi32>
    %c96_i32 = arith.constant 96 : i32
    %84 = vector.broadcast %c96_i32 : i32 to vector<1x1x128xi32>
    %85 = arith.cmpi slt, %16, %84 : vector<1x1x128xi32>
    %86 = arith.andi %83, %85 : vector<1x1x128xi1>
    %cst_25 = arith.constant 0.000000e+00 : f32
    %87 = vector.shape_cast %86 : vector<1x1x128xi1> to vector<1x1x128xi1>
    %88 = vector.broadcast %87 : vector<1x1x128xi1> to vector<2x8x128xi1>
    %89 = vector.broadcast %cst_25 : f32 to vector<2x8x128xf32>
    %90 = arith.select %88, %10, %89 : vector<2x8x128xi1>, vector<2x8x128xf32>
    %cst_26 = arith.constant 0.000000e+00 : f32
    %91 = vector.shape_cast %86 : vector<1x1x128xi1> to vector<1x1x128xi1>
    %92 = vector.broadcast %91 : vector<1x1x128xi1> to vector<2x8x128xi1>
    %93 = vector.broadcast %cst_26 : f32 to vector<2x8x128xf32>
    %94 = arith.select %92, %12, %93 : vector<2x8x128xi1>, vector<2x8x128xf32>
    %cst_27 = arith.constant dense<0.000000e+00> : vector<2x8x8xf32>
    %95 = tpu.matmul %8, %90, %cst_27 {dimension_numbers = #tpu.dot_dimension_numbers<[2], [2], [1], [1], [0, 0, 0, 1, 1, 1], [0], [0]>} : vector<2x8x128xf32>, vector<2x8x128xf32>, vector<2x8x8xf32> -> vector<2x8x8xf32>
    %cst_28 = arith.constant 0.353553385 : f32
    %96 = vector.broadcast %cst_28 : f32 to vector<2x8x8xf32>
    %97 = arith.mulf %95, %96 : vector<2x8x8xf32>
    %cst_29 = arith.constant -1.000000e+30 : f32
    %98 = vector.shape_cast %15 : vector<1x8x8xi1> to vector<1x8x8xi1>
    %99 = vector.broadcast %98 : vector<1x8x8xi1> to vector<2x8x8xi1>
    %100 = vector.broadcast %cst_29 : f32 to vector<2x8x8xf32>
    %101 = arith.select %99, %97, %100 : vector<2x8x8xi1>, vector<2x8x8xf32>
    %cst_30 = arith.constant dense<0xFF800000> : vector<2x8xf32>
    %102 = vector.multi_reduction <maximumf>, %101, %cst_30 [2] : vector<2x8x8xf32> to vector<2x8xf32>
    %103 = vector.shape_cast %102 : vector<2x8xf32> to vector<2x8x1xf32>
    %104 = vector.broadcast %103 : vector<2x8x1xf32> to vector<2x8x8xf32>
    %105 = arith.subf %101, %104 : vector<2x8x8xf32>
    %106 = math.exp %105 : vector<2x8x8xf32>
    %cst_31 = arith.constant dense<0.000000e+00> : vector<2x8xf32>
    %107 = vector.multi_reduction <add>, %106, %cst_31 [2] : vector<2x8x8xf32> to vector<2x8xf32>
    %108 = vector.shape_cast %107 : vector<2x8xf32> to vector<2x8x1xf32>
    %109 = tpu.reciprocal %108 {approx = true} : vector<2x8x1xf32> -> vector<2x8x1xf32>
    %110 = vector.broadcast %109 : vector<2x8x1xf32> to vector<2x8x8xf32>
    %111 = arith.mulf %106, %110 : vector<2x8x8xf32>
    %cst_32 = arith.constant dense<0.000000e+00> : vector<2x8x128xf32>
    %112 = tpu.matmul %111, %94, %cst_32 {dimension_numbers = #tpu.dot_dimension_numbers<[2], [1], [1], [2], [0, 0, 0, 1, 1, 2], [0], [0]>} : vector<2x8x8xf32>, vector<2x8x128xf32>, vector<2x8x128xf32> -> vector<2x8x128xf32>
    %113 = arith.addf %81, %112 : vector<2x8x128xf32>
    %c96_i32_33 = arith.constant 96 : i32
    %114 = vector.broadcast %c96_i32_33 : i32 to vector<1x1x128xi32>
    %115 = arith.cmpi sge, %16, %114 : vector<1x1x128xi32>
    %c128_i32 = arith.constant 128 : i32
    %116 = vector.broadcast %c128_i32 : i32 to vector<1x1x128xi32>
    %117 = arith.cmpi slt, %16, %116 : vector<1x1x128xi32>
    %118 = arith.andi %115, %117 : vector<1x1x128xi1>
    %cst_34 = arith.constant 0.000000e+00 : f32
    %119 = vector.shape_cast %118 : vector<1x1x128xi1> to vector<1x1x128xi1>
    %120 = vector.broadcast %119 : vector<1x1x128xi1> to vector<2x8x128xi1>
    %121 = vector.broadcast %cst_34 : f32 to vector<2x8x128xf32>
    %122 = arith.select %120, %10, %121 : vector<2x8x128xi1>, vector<2x8x128xf32>
    %cst_35 = arith.constant 0.000000e+00 : f32
    %123 = vector.shape_cast %118 : vector<1x1x128xi1> to vector<1x1x128xi1>
    %124 = vector.broadcast %123 : vector<1x1x128xi1> to vector<2x8x128xi1>
    %125 = vector.broadcast %cst_35 : f32 to vector<2x8x128xf32>
    %126 = arith.select %124, %12, %125 : vector<2x8x128xi1>, vector<2x8x128xf32>
    %cst_36 = arith.constant dense<0.000000e+00> : vector<2x8x8xf32>
    %127 = tpu.matmul %8, %122, %cst_36 {dimension_numbers = #tpu.dot_dimension_numbers<[2], [2], [1], [1], [0, 0, 0, 1, 1, 1], [0], [0]>} : vector<2x8x128xf32>, vector<2x8x128xf32>, vector<2x8x8xf32> -> vector<2x8x8xf32>
    %cst_37 = arith.constant 0.353553385 : f32
    %128 = vector.broadcast %cst_37 : f32 to vector<2x8x8xf32>
    %129 = arith.mulf %127, %128 : vector<2x8x8xf32>
    %cst_38 = arith.constant -1.000000e+30 : f32
    %130 = vector.shape_cast %15 : vector<1x8x8xi1> to vector<1x8x8xi1>
    %131 = vector.broadcast %130 : vector<1x8x8xi1> to vector<2x8x8xi1>
    %132 = vector.broadcast %cst_38 : f32 to vector<2x8x8xf32>
    %133 = arith.select %131, %129, %132 : vector<2x8x8xi1>, vector<2x8x8xf32>
    %cst_39 = arith.constant dense<0xFF800000> : vector<2x8xf32>
    %134 = vector.multi_reduction <maximumf>, %133, %cst_39 [2] : vector<2x8x8xf32> to vector<2x8xf32>
    %135 = vector.shape_cast %134 : vector<2x8xf32> to vector<2x8x1xf32>
    %136 = vector.broadcast %135 : vector<2x8x1xf32> to vector<2x8x8xf32>
    %137 = arith.subf %133, %136 : vector<2x8x8xf32>
    %138 = math.exp %137 : vector<2x8x8xf32>
    %cst_40 = arith.constant dense<0.000000e+00> : vector<2x8xf32>
    %139 = vector.multi_reduction <add>, %138, %cst_40 [2] : vector<2x8x8xf32> to vector<2x8xf32>
    %140 = vector.shape_cast %139 : vector<2x8xf32> to vector<2x8x1xf32>
    %141 = tpu.reciprocal %140 {approx = true} : vector<2x8x1xf32> -> vector<2x8x1xf32>
    %142 = vector.broadcast %141 : vector<2x8x1xf32> to vector<2x8x8xf32>
    %143 = arith.mulf %138, %142 : vector<2x8x8xf32>
    %cst_41 = arith.constant dense<0.000000e+00> : vector<2x8x128xf32>
    %144 = tpu.matmul %143, %126, %cst_41 {dimension_numbers = #tpu.dot_dimension_numbers<[2], [1], [1], [2], [0, 0, 0, 1, 1, 2], [0], [0]>} : vector<2x8x8xf32>, vector<2x8x128xf32>, vector<2x8x128xf32> -> vector<2x8x128xf32>
    %145 = arith.addf %113, %144 : vector<2x8x128xf32>
    %146 = vector.shape_cast %145 : vector<2x8x128xf32> to vector<16x128xf32>
    %c0_42 = arith.constant 0 : index
    %c0_43 = arith.constant 0 : index
    %147 = vector.load %arg4[%c0_42, %c0_43] : memref<128x128xf32, #tpu.memory_space<vmem>>, vector<128x128xf32>
    %cst_44 = arith.constant dense<0.000000e+00> : vector<16x128xf32>
    %148 = tpu.matmul %146, %147, %cst_44 {dimension_numbers = #tpu.dot_dimension_numbers<[1], [0], [0], [1], [0, 0, 1, 1], [], []>} : vector<16x128xf32>, vector<128x128xf32>, vector<16x128xf32> -> vector<16x128xf32>
    %c0_45 = arith.constant 0 : index
    %c0_46 = arith.constant 0 : index
    %149 = vector.load %arg5[%c0_45, %c0_46] : memref<1x128xf32, #tpu.memory_space<vmem>>, vector<1x128xf32>
    %150 = vector.broadcast %149 : vector<1x128xf32> to vector<16x128xf32>
    %151 = arith.addf %148, %150 : vector<16x128xf32>
    %152 = vector.shape_cast %151 : vector<16x128xf32> to vector<2x8x128xf32>
    %c0_47 = arith.constant 0 : index
    %c0_48 = arith.constant 0 : index
    %c0_49 = arith.constant 0 : index
    %153 = vector.load %arg6[%c0_47, %c0_48, %c0_49] : memref<2x8x128xf32, #tpu.memory_space<vmem>>, vector<2x8x128xf32>
    tpu.vector_store %arg6[%c0_47, %c0_48, %c0_49], %152 {strides = array<i32>} : memref<2x8x128xf32, #tpu.memory_space<vmem>>, vector<2x8x128xf32>,
    return
  }
  func.func @transform_0(%arg0: i32) -> (i32, i32, i32) {
    %c0_i32 = arith.constant 0 : i32
    %c0_i32_0 = arith.constant 0 : i32
    %c0_i32_1 = arith.constant 0 : i32
    return %arg0, %c0_i32, %c0_i32_0 : i32, i32, i32
  }
  func.func @transform_1(%arg0: i32) -> (i32, i32) {
    %c0_i32 = arith.constant 0 : i32
    %c0_i32_0 = arith.constant 0 : i32
    %c0_i32_1 = arith.constant 0 : i32
    return %c0_i32, %c0_i32_0 : i32, i32
  }
  func.func @transform_2(%arg0: i32) -> (i32, i32) {
    %c0_i32 = arith.constant 0 : i32
    %c0_i32_0 = arith.constant 0 : i32
    %c0_i32_1 = arith.constant 0 : i32
    return %c0_i32, %c0_i32_0 : i32, i32
  }
  func.func @transform_3(%arg0: i32) -> (i32, i32) {
    %c0_i32 = arith.constant 0 : i32
    %c0_i32_0 = arith.constant 0 : i32
    %c0_i32_1 = arith.constant 0 : i32
    return %c0_i32, %c0_i32_0 : i32, i32
  }
  func.func @transform_4(%arg0: i32) -> (i32, i32) {
    %c0_i32 = arith.constant 0 : i32
    %c0_i32_0 = arith.constant 0 : i32
    %c0_i32_1 = arith.constant 0 : i32
    return %c0_i32, %c0_i32_0 : i32, i32
  }
  func.func @transform_5(%arg0: i32) -> (i32, i32, i32) {
    %c0_i32 = arith.constant 0 : i32
    %c0_i32_0 = arith.constant 0 : i32
    %c0_i32_1 = arith.constant 0 : i32
    return %arg0, %c0_i32, %c0_i32_0 : i32, i32, i32
  }
}

</mosaic_0001>

<llo_original>
// kernel: tpu_custom_call.1
$region0: #{tpu_custom_call.1}
  #allocation0 [shape = 'u32[]', space=smem, size = 0x4, offset = 0x4, fixed_abs, tag = 'smem constant byte address 0x4 - core index']
  #allocation1 [shape = 'u32[144,128]{1,0:T(1,128)}', space=vmem, size = 0x12000, scoped, tag = 'internal scratch']
  %s0 = inlined_call_operand.hbm [shape: f32[2,8,128], index: 0, kind: input, shape index: {}]
  %s1 = inlined_call_operand.hbm [shape: f32[128,384], index: 1, kind: input, shape index: {}]
  %s2 = inlined_call_operand.vmem [shape: f32[1,384], index: 2, kind: input, shape index: {}]
  %s3 = inlined_call_operand.hbm [shape: f32[128,128], index: 3, kind: input, shape index: {}]
  %s4 = inlined_call_operand.vmem [shape: f32[1,128], index: 4, kind: input, shape index: {}]
  %s5 = inlined_call_operand.hbm [shape: f32[2,8,128], index: 5, kind: output, shape index: {}]
  %s6 = sld [smem:[#allocation0]]
  $region42: #{tpu_custom_call.1} parent=0
    _
  %s8 = ssub.s32 1, %s6
  %s9 = scalar_select 0, %s8, %s6
  $region1: #{tpu_custom_call.1} parent=0
    #allocation2 [shape = 'u8[8192]{0}', space=vmem, size = 0x2000, scoped, tag = 'input window, operand 0, single buffered']
    #allocation3 [shape = 's32[1]{0}', space=sflag, size = 0x4, scoped, tag = 'scoped memory for tpu_custom_call.1']
    #allocation4 [shape = 's32[1]{0}', space=sflag, size = 0x4, scoped, tag = 'scoped memory for tpu_custom_call.1']
    #allocation5 [shape = 'u8[196608]{0}', space=vmem, size = 0x30000, scoped, tag = 'input window, operand 1, single buffered']
    #allocation6 [shape = 's32[1]{0}', space=sflag, size = 0x4, scoped, tag = 'scoped memory for tpu_custom_call.1']
    #allocation7 [shape = 'u8[65536]{0}', space=vmem, size = 0x10000, scoped, tag = 'input window, operand 3, single buffered']
    #allocation8 [shape = 'u8[8192]{0}', space=vmem, size = 0x2000, scoped, tag = 'output window, operand 0, single buffered']
    %10 = vsyncpa [#allocation3], 0
    %11 = vsyncpa [#allocation6], 0
    %12 = vsyncpa [#allocation4], 0
    // Predicated region
    $region2: #{tpu_custom_call.1} parent=1 // pred_check
      _
    $region3: #{tpu_custom_call.1} parent=1 // pred_check_branch
      %14 = sbr.rel (0) target = $region5
    $region4: #{tpu_custom_call.1} parent=1 // pred_region
      %s16 = ssub.s32 256, 256
      %17 = vsyncadd [#allocation3], %s16
      %s18 = sshll.u32 [#allocation2], 4
      %s19 = int_to_ptr.vmem [resolvable:$true] %s18
      %24 = dma.hbm_to_vmem [thread:$0]  %s0, 256, %s19, [#allocation3], 128, 128, 8
    $region5: #{tpu_custom_call.1} parent=1 // pred_fallthru
      _
    // Predicated region
    $region6: #{tpu_custom_call.1} parent=1 // pred_check
      _
    $region7: #{tpu_custom_call.1} parent=1 // pred_check_branch
      %26 = sbr.rel (0) target = $region9
    $region8: #{tpu_custom_call.1} parent=1 // pred_region
      %s28 = ssub.s32 6144, 6144
      %29 = vsyncadd [#allocation6], %s28
      %s30 = sshll.u32 [#allocation5], 4
      %s31 = int_to_ptr.vmem [resolvable:$true] %s30
      %36 = dma.hbm_to_vmem [thread:$0]  %s1, 6144, %s31, [#allocation6], 384, 384, 24
    $region9: #{tpu_custom_call.1} parent=1 // pred_fallthru
      _
    // Predicated region
    $region10: #{tpu_custom_call.1} parent=1 // pred_check
      _
    $region11: #{tpu_custom_call.1} parent=1 // pred_check_branch
      %38 = sbr.rel (0) target = $region13
    $region12: #{tpu_custom_call.1} parent=1 // pred_region
      _
    $region13: #{tpu_custom_call.1} parent=1 // pred_fallthru
      _
    // Predicated region
    $region14: #{tpu_custom_call.1} parent=1 // pred_check
      _
    $region15: #{tpu_custom_call.1} parent=1 // pred_check_branch
      %40 = sbr.rel (0) target = $region17
    $region16: #{tpu_custom_call.1} parent=1 // pred_region
      %s42 = ssub.s32 2048, 2048
      %43 = vsyncadd [#allocation6], %s42
      %s44 = sshll.u32 [#allocation7], 4
      %s45 = int_to_ptr.vmem [resolvable:$true] %s44
      %50 = dma.hbm_to_vmem [thread:$0]  %s3, 2048, %s45, [#allocation6], 128, 128, 8
    $region17: #{tpu_custom_call.1} parent=1 // pred_fallthru
      _
    // Predicated region
    $region18: #{tpu_custom_call.1} parent=1 // pred_check
      _
    $region19: #{tpu_custom_call.1} parent=1 // pred_check_branch
      %52 = sbr.rel (0) target = $region21
    $region20: #{tpu_custom_call.1} parent=1 // pred_region
      _
    $region21: #{tpu_custom_call.1} parent=1 // pred_fallthru
      _
    // Predicated region
    $region22: #{tpu_custom_call.1} parent=1 // pred_check
      _
    $region23: #{tpu_custom_call.1} parent=1 // pred_check_branch
      %54 = sbr.rel (0) target = $region25
    $region24: #{tpu_custom_call.1} parent=1 // pred_region
      %55 = dma.done [#allocation3], 256
    $region25: #{tpu_custom_call.1} parent=1 // pred_fallthru
      _
    // Predicated region
    $region26: #{tpu_custom_call.1} parent=1 // pred_check
      _
    $region27: #{tpu_custom_call.1} parent=1 // pred_check_branch
      %57 = sbr.rel (0) target = $region29
    $region28: #{tpu_custom_call.1} parent=1 // pred_region
      %58 = dma.done [#allocation6], 6144
    $region29: #{tpu_custom_call.1} parent=1 // pred_fallthru
      _
    // Predicated region
    $region30: #{tpu_custom_call.1} parent=1 // pred_check
      _
    $region31: #{tpu_custom_call.1} parent=1 // pred_check_branch
      %60 = sbr.rel (0) target = $region33
    $region32: #{tpu_custom_call.1} parent=1 // pred_region
      %61 = dma.done [#allocation6], 2048
    $region33: #{tpu_custom_call.1} parent=1 // pred_fallthru
      _
    %v62 = vld [vmem:[#allocation2] sm:$0xff]
    %v63 = vld [vmem:[#allocation2 + $0x8] sm:$0xff]
    %v64 = vld [vmem:[#allocation5] sm:$0xff]
    %v65 = vld [vmem:[#allocation5 + $0x8] sm:$0xff]
    %v66 = vld [vmem:[#allocation5 + $0x10] sm:$0xff]
    %v67 = vld [vmem:[#allocation5 + $0x18] sm:$0xff]
    %v68 = vld [vmem:[#allocation5 + $0x20] sm:$0xff]
    %v69 = vld [vmem:[#allocation5 + $0x28] sm:$0xff]
    %v70 = vld [vmem:[#allocation5 + $0x30] sm:$0xff]
    %v71 = vld [vmem:[#allocation5 + $0x38] sm:$0xff]
    %v72 = vld [vmem:[#allocation5 + $0x40] sm:$0xff]
    %v73 = vld [vmem:[#allocation5 + $0x48] sm:$0xff]
    %v74 = vld [vmem:[#allocation5 + $0x50] sm:$0xff]
    %v75 = vld [vmem:[#allocation5 + $0x58] sm:$0xff]
    %v76 = vld [vmem:[#allocation5 + $0x60] sm:$0xff]
    %v77 = vld [vmem:[#allocation5 + $0x68] sm:$0xff]
    %v78 = vld [vmem:[#allocation5 + $0x70] sm:$0xff]
    %v79 = vld [vmem:[#allocation5 + $0x78] sm:$0xff]
    %v80 = vld [vmem:[#allocation5 + $0x80] sm:$0xff]
    %v81 = vld [vmem:[#allocation5 + $0x88] sm:$0xff]
    %v82 = vld [vmem:[#allocation5 + $0x90] sm:$0xff]
    %v83 = vld [vmem:[#allocation5 + $0x98] sm:$0xff]
    %v84 = vld [vmem:[#allocation5 + $0xa0] sm:$0xff]
    %v85 = vld [vmem:[#allocation5 + $0xa8] sm:$0xff]
    %v86 = vld [vmem:[#allocation5 + $0xb0] sm:$0xff]
    %v87 = vld [vmem:[#allocation5 + $0xb8] sm:$0xff]
    %v88 = vld [vmem:[#allocation5 + $0xc0] sm:$0xff]
    %v89 = vld [vmem:[#allocation5 + $0xc8] sm:$0xff]
    %v90 = vld [vmem:[#allocation5 + $0xd0] sm:$0xff]
    %v91 = vld [vmem:[#allocation5 + $0xd8] sm:$0xff]
    %v92 = vld [vmem:[#allocation5 + $0xe0] sm:$0xff]
    %v93 = vld [vmem:[#allocation5 + $0xe8] sm:$0xff]
    %v94 = vld [vmem:[#allocation5 + $0xf0] sm:$0xff]
    %v95 = vld [vmem:[#allocation5 + $0xf8] sm:$0xff]
    %v96 = vld [vmem:[#allocation5 + $0x100] sm:$0xff]
    %v97 = vld [vmem:[#allocation5 + $0x108] sm:$0xff]
    %v98 = vld [vmem:[#allocation5 + $0x110] sm:$0xff]
    %v99 = vld [vmem:[#allocation5 + $0x118] sm:$0xff]
    %v100 = vld [vmem:[#allocation5 + $0x120] sm:$0xff]
    %v101 = vld [vmem:[#allocation5 + $0x128] sm:$0xff]
    %v102 = vld [vmem:[#allocation5 + $0x130] sm:$0xff]
    %v103 = vld [vmem:[#allocation5 + $0x138] sm:$0xff]
    %v104 = vld [vmem:[#allocation5 + $0x140] sm:$0xff]
    %v105 = vld [vmem:[#allocation5 + $0x148] sm:$0xff]
    %v106 = vld [vmem:[#allocation5 + $0x150] sm:$0xff]
    %v107 = vld [vmem:[#allocation5 + $0x158] sm:$0xff]
    %v108 = vld [vmem:[#allocation5 + $0x160] sm:$0xff]
    %v109 = vld [vmem:[#allocation5 + $0x168] sm:$0xff]
    %v110 = vld [vmem:[#allocation5 + $0x170] sm:$0xff]
    %v111 = vld [vmem:[#allocation5 + $0x178] sm:$0xff]
    %v112 = vld [vmem:[%s2] sm:$0x7]
    %v114 = vlaneseq
    %v115 = vshrl.u32 %v114, 7
    %v116 = vsub.s32 0, %v115
    %v117 = vrot.slane %v112, %v116
    %v118 = vlaneseq
    %v119 = vshrl.u32 %v118, 7
    %v120 = vsub.s32 1, %v119
    %v121 = vrot.slane %v112, %v120
    %v122 = vlaneseq
    %v123 = vshrl.u32 %v122, 7
    %v124 = vsub.s32 2, %v123
    %v125 = vrot.slane %v112, %v124
    %129 = vmatprep.subr.mxu0 %v110
    %130 = vmatpush1.msra.mxu0 %v109
    %131 = vmatprep.subr.mxu0 %v107
    %132 = vmatpush1.msra.mxu0 %v106
    %133 = vmatprep.subr.mxu0 %v104
    %134 = vmatpush1.msra.mxu0 %v103
    %135 = vmatprep.subr.mxu0 %v101
    %136 = vmatpush1.msra.mxu0 %v100
    %137 = vmatprep.subr.mxu0 %v98
    %138 = vmatpush1.msra.mxu0 %v97
    %139 = vmatprep.subr.mxu0 %v95
    %140 = vmatpush1.msra.mxu0 %v94
    %141 = vmatprep.subr.mxu0 %v92
    %142 = vmatpush1.msra.mxu0 %v91
    %143 = vmatprep.subr.mxu0 %v89
    %144 = vmatpush1.msra.mxu0 %v88
    %145 = vmatprep.subr.mxu0 %v86
    %146 = vmatpush1.msra.mxu0 %v85
    %147 = vmatprep.subr.mxu0 %v83
    %148 = vmatpush1.msra.mxu0 %v82
    %149 = vmatprep.subr.mxu0 %v80
    %150 = vmatpush1.msra.mxu0 %v79
    %151 = vmatprep.subr.mxu0 %v77
    %152 = vmatpush1.msra.mxu0 %v76
    %153 = vmatprep.subr.mxu0 %v74
    %154 = vmatpush1.msra.mxu0 %v73
    %155 = vmatprep.subr.mxu0 %v71
    %156 = vmatpush1.msra.mxu0 %v70
    %157 = vmatprep.subr.mxu0 %v68
    %158 = vmatpush1.msra.mxu0 %v67
    %159 = vmatprep.subr.mxu0 %v65
    %160 = vmatpush1.msra.mxu0 %v64
    %161 = vmatprep.subr.mxu0 0.0
    %162 = vmatpush2.msra.mxu0 0.0
    %163 = vmatprep.subr.mxu0 0.0
    %164 = vmatpush2.msra.mxu0 0.0
    %165 = vmatprep.subr.mxu0 0.0
    %166 = vmatpush2.msra.mxu0 0.0
    %167 = vmatprep.subr.mxu0 0.0
    %168 = vmatpush2.msra.mxu0 0.0
    %169 = vmatprep.subr.mxu0 0.0
    %170 = vmatpush2.msra.mxu0 0.0
    %171 = vmatprep.subr.mxu0 0.0
    %172 = vmatpush2.msra.mxu0 0.0
    %173 = vmatprep.subr.mxu0 0.0
    %174 = vmatpush2.msra.mxu0 0.0
    %175 = vmatprep.subr.mxu0 0.0
    %176 = vmatpush2.msra.mxu0 0.0
    %177 = vmatprep.subr.mxu0 0.0
    %178 = vmatpush2.msra.mxu0 0.0
    %179 = vmatprep.subr.mxu0 0.0
    %180 = vmatpush2.msra.mxu0 0.0
    %181 = vmatprep.subr.mxu0 0.0
    %182 = vmatpush2.msra.mxu0 0.0
    %183 = vmatprep.subr.mxu0 0.0
    %184 = vmatpush2.msra.mxu0 0.0
    %185 = vmatprep.subr.mxu0 0.0
    %186 = vmatpush2.msra.mxu0 0.0
    %187 = vmatprep.subr.mxu0 0.0
    %188 = vmatpush2.msra.mxu0 0.0
    %189 = vmatprep.subr.mxu0 0.0
    %190 = vmatpush2.msra.mxu0 0.0
    %191 = vmatprep.subr.mxu0 0.0
    %192 = vmatpush2.msra.mxu0 0.0
    %193 = vmatprep.mubr.f32.mxu0 0.0
    %194 = vmatmul.mubr.f32.gmra.mxu0 %v62
    %v195 = vpop.f32.mrf.mxu0
    %v196 = vadd.f32 %v117, %v195
    %v197 = vpop.f32.mrf.mxu0
    %v198 = vadd.f32 %v121, %v197
    %199 = vmatprep.mubr.f32.mxu0 0.0
    %200 = vmatmul.mubr.f32.gmra.mxu0 %v63
    %v201 = vpop.f32.mrf.mxu0
    %v202 = vadd.f32 %v117, %v201
    %v203 = vpop.f32.mrf.mxu0
    %v204 = vadd.f32 %v121, %v203
    %205 = vdwg.mxu0
    %206 = vmatprep.subr.mxu0 0.0
    %207 = vmatpush1.msra.mxu0 %v111
    %208 = vmatprep.subr.mxu0 0.0
    %209 = vmatpush1.msra.mxu0 %v108
    %210 = vmatprep.subr.mxu0 0.0
    %211 = vmatpush1.msra.mxu0 %v105
    %212 = vmatprep.subr.mxu0 0.0
    %213 = vmatpush1.msra.mxu0 %v102
    %214 = vmatprep.subr.mxu0 0.0
    %215 = vmatpush1.msra.mxu0 %v99
    %216 = vmatprep.subr.mxu0 0.0
    %217 = vmatpush1.msra.mxu0 %v96
    %218 = vmatprep.subr.mxu0 0.0
    %219 = vmatpush1.msra.mxu0 %v93
    %220 = vmatprep.subr.mxu0 0.0
    %221 = vmatpush1.msra.mxu0 %v90
    %222 = vmatprep.subr.mxu0 0.0
    %223 = vmatpush1.msra.mxu0 %v87
    %224 = vmatprep.subr.mxu0 0.0
    %225 = vmatpush1.msra.mxu0 %v84
    %226 = vmatprep.subr.mxu0 0.0
    %227 = vmatpush1.msra.mxu0 %v81
    %228 = vmatprep.subr.mxu0 0.0
    %229 = vmatpush1.msra.mxu0 %v78
    %230 = vmatprep.subr.mxu0 0.0
    %231 = vmatpush1.msra.mxu0 %v75
    %232 = vmatprep.subr.mxu0 0.0
    %233 = vmatpush1.msra.mxu0 %v72
    %234 = vmatprep.subr.mxu0 0.0
    %235 = vmatpush1.msra.mxu0 %v69
    %236 = vmatprep.subr.mxu0 0.0
    %237 = vmatpush1.msra.mxu0 %v66
    %238 = vmatprep.subr.mxu0 0.0
    %239 = vmatpush2.msra.mxu0 0.0
    %240 = vmatprep.subr.mxu0 0.0
    %241 = vmatpush2.msra.mxu0 0.0
    %242 = vmatprep.subr.mxu0 0.0
    %243 = vmatpush2.msra.mxu0 0.0
    %244 = vmatprep.subr.mxu0 0.0
    %245 = vmatpush2.msra.mxu0 0.0
    %246 = vmatprep.subr.mxu0 0.0
    %247 = vmatpush2.msra.mxu0 0.0
    %248 = vmatprep.subr.mxu0 0.0
    %249 = vmatpush2.msra.mxu0 0.0
    %250 = vmatprep.subr.mxu0 0.0
    %251 = vmatpush2.msra.mxu0 0.0
    %252 = vmatprep.subr.mxu0 0.0
    %253 = vmatpush2.msra.mxu0 0.0
    %254 = vmatprep.subr.mxu0 0.0
    %255 = vmatpush2.msra.mxu0 0.0
    %256 = vmatprep.subr.mxu0 0.0
    %257 = vmatpush2.msra.mxu0 0.0
    %258 = vmatprep.subr.mxu0 0.0
    %259 = vmatpush2.msra.mxu0 0.0
    %260 = vmatprep.subr.mxu0 0.0
    %261 = vmatpush2.msra.mxu0 0.0
    %262 = vmatprep.subr.mxu0 0.0
    %263 = vmatpush2.msra.mxu0 0.0
    %264 = vmatprep.subr.mxu0 0.0
    %265 = vmatpush2.msra.mxu0 0.0
    %266 = vmatprep.subr.mxu0 0.0
    %267 = vmatpush2.msra.mxu0 0.0
    %268 = vmatprep.subr.mxu0 0.0
    %269 = vmatpush2.msra.mxu0 0.0
    %270 = vmatprep.mubr.f32.mxu0 0.0
    %271 = vmatmul.mubr.f32.gmra.mxu0 %v62
    %v272 = vpop.f32.mrf.mxu0
    %v273 = vadd.f32 %v125, %v272
    %v274 = vpop.f32.mrf.mxu0
    %275 = vmatprep.mubr.f32.mxu0 0.0
    %276 = vmatmul.mubr.f32.gmra.mxu0 %v63
    %v277 = vpop.f32.mrf.mxu0
    %v278 = vadd.f32 %v125, %v277
    %v279 = vpop.f32.mrf.mxu0
    %280 = vdwg.mxu0
    %v281 = vlaneseq
    %v282 = vshrl.u32 %v281, 7
    %v283 = vlaneseq
    %v284 = vand.u32 %v283, 127
    %vm285 = vcmp.le.s32.totalorder %v284, %v282
    %vm286 = vcmp.ge.s32.totalorder %v284, 0
    %vm287 = vcmp.lt.s32.totalorder %v284, 32
    %vm288 = vmand %vm286, %vm287
    %v289 = vsel %vm288, 1, 0
    %vm290 = vcmp.eq.s32.totalorder %v289, 1
    %v291 = vsel %vm290, %v198, 0.0
    %v292 = vsel %vm290, %v204, 0.0
    %v293 = vsel %vm290, %v273, 0.0
    %v294 = vsel %vm290, %v278, 0.0
    %295 = vmatprep.subr.mxu0 0.0
    %296 = vmatpush1.xpose.msra.mxu0 0.0
    %297 = vmatprep.subr.mxu0 0.0
    %298 = vmatpush1.xpose.msra.mxu0 0.0
    %299 = vmatprep.subr.mxu0 0.0
    %300 = vmatpush1.xpose.msra.mxu0 0.0
    %301 = vmatprep.subr.mxu0 0.0
    %302 = vmatpush1.xpose.msra.mxu0 0.0
    %303 = vmatprep.subr.mxu0 0.0
    %304 = vmatpush1.xpose.msra.mxu0 0.0
    %305 = vmatprep.subr.mxu0 0.0
    %306 = vmatpush1.xpose.msra.mxu0 0.0
    %307 = vmatprep.subr.mxu0 0.0
    %308 = vmatpush1.xpose.msra.mxu0 0.0
    %309 = vmatprep.subr.mxu0 0.0
    %310 = vmatpush1.xpose.msra.mxu0 0.0
    %311 = vmatprep.subr.mxu0 0.0
    %312 = vmatpush1.xpose.msra.mxu0 0.0
    %313 = vmatprep.subr.mxu0 0.0
    %314 = vmatpush1.xpose.msra.mxu0 0.0
    %315 = vmatprep.subr.mxu0 0.0
    %316 = vmatpush1.xpose.msra.mxu0 0.0
    %317 = vmatprep.subr.mxu0 0.0
    %318 = vmatpush1.xpose.msra.mxu0 0.0
    %319 = vmatprep.subr.mxu0 0.0
    %320 = vmatpush1.xpose.msra.mxu0 0.0
    %321 = vmatprep.subr.mxu0 0.0
    %322 = vmatpush1.xpose.msra.mxu0 0.0
    %323 = vmatprep.subr.mxu0 0.0
    %324 = vmatpush1.xpose.msra.mxu0 0.0
    %325 = vmatprep.subr.mxu0 0.0
    %326 = vmatpush1.xpose.msra.mxu0 %v291
    %327 = vmatprep.subr.mxu0 0.0
    %328 = vmatpush2.xpose.msra.mxu0 0.0
    %329 = vmatprep.subr.mxu0 0.0
    %330 = vmatpush2.xpose.msra.mxu0 0.0
    %331 = vmatprep.subr.mxu0 0.0
    %332 = vmatpush2.xpose.msra.mxu0 0.0
    %333 = vmatprep.subr.mxu0 0.0
    %334 = vmatpush2.xpose.msra.mxu0 0.0
    %335 = vmatprep.subr.mxu0 0.0
    %336 = vmatpush2.xpose.msra.mxu0 0.0
    %337 = vmatprep.subr.mxu0 0.0
    %338 = vmatpush2.xpose.msra.mxu0 0.0
    %339 = vmatprep.subr.mxu0 0.0
    %340 = vmatpush2.xpose.msra.mxu0 0.0
    %341 = vmatprep.subr.mxu0 0.0
    %342 = vmatpush2.xpose.msra.mxu0 0.0
    %343 = vmatprep.subr.mxu0 0.0
    %344 = vmatpush2.xpose.msra.mxu0 0.0
    %345 = vmatprep.subr.mxu0 0.0
    %346 = vmatpush2.xpose.msra.mxu0 0.0
    %347 = vmatprep.subr.mxu0 0.0
    %348 = vmatpush2.xpose.msra.mxu0 0.0
    %349 = vmatprep.subr.mxu0 0.0
    %350 = vmatpush2.xpose.msra.mxu0 0.0
    %351 = vmatprep.subr.mxu0 0.0
    %352 = vmatpush2.xpose.msra.mxu0 0.0
    %353 = vmatprep.subr.mxu0 0.0
    %354 = vmatpush2.xpose.msra.mxu0 0.0
    %355 = vmatprep.subr.mxu0 0.0
    %356 = vmatpush2.xpose.msra.mxu0 0.0
    %357 = vmatprep.subr.mxu0 0.0
    %358 = vmatpush2.xpose.msra.mxu0 0.0
    %359 = vmatprep.mubr.f32.mxu0 0.0
    %360 = vmatmul.mubr.f32.gmra.mxu0 %v196
    %v361 = vpop.f32.mrf.mxu0
    %v362 = vadd.f32 0.0, %v361
    %v363 = vpop.f32.mrf.mxu0
    %364 = vdwg.mxu0
    %365 = vmatprep.subr.mxu0 0.0
    %366 = vmatpush1.xpose.msra.mxu0 0.0
    %367 = vmatprep.subr.mxu0 0.0
    %368 = vmatpush1.xpose.msra.mxu0 0.0
    %369 = vmatprep.subr.mxu0 0.0
    %370 = vmatpush1.xpose.msra.mxu0 0.0
    %371 = vmatprep.subr.mxu0 0.0
    %372 = vmatpush1.xpose.msra.mxu0 0.0
    %373 = vmatprep.subr.mxu0 0.0
    %374 = vmatpush1.xpose.msra.mxu0 0.0
    %375 = vmatprep.subr.mxu0 0.0
    %376 = vmatpush1.xpose.msra.mxu0 0.0
    %377 = vmatprep.subr.mxu0 0.0
    %378 = vmatpush1.xpose.msra.mxu0 0.0
    %379 = vmatprep.subr.mxu0 0.0
    %380 = vmatpush1.xpose.msra.mxu0 0.0
    %381 = vmatprep.subr.mxu0 0.0
    %382 = vmatpush1.xpose.msra.mxu0 0.0
    %383 = vmatprep.subr.mxu0 0.0
    %384 = vmatpush1.xpose.msra.mxu0 0.0
    %385 = vmatprep.subr.mxu0 0.0
    %386 = vmatpush1.xpose.msra.mxu0 0.0
    %387 = vmatprep.subr.mxu0 0.0
    %388 = vmatpush1.xpose.msra.mxu0 0.0
    %389 = vmatprep.subr.mxu0 0.0
    %390 = vmatpush1.xpose.msra.mxu0 0.0
    %391 = vmatprep.subr.mxu0 0.0
    %392 = vmatpush1.xpose.msra.mxu0 0.0
    %393 = vmatprep.subr.mxu0 0.0
    %394 = vmatpush1.xpose.msra.mxu0 0.0
    %395 = vmatprep.subr.mxu0 0.0
    %396 = vmatpush1.xpose.msra.mxu0 %v292
    %397 = vmatprep.subr.mxu0 0.0
    %398 = vmatpush2.xpose.msra.mxu0 0.0
    %399 = vmatprep.subr.mxu0 0.0
    %400 = vmatpush2.xpose.msra.mxu0 0.0
    %401 = vmatprep.subr.mxu0 0.0
    %402 = vmatpush2.xpose.msra.mxu0 0.0
    %403 = vmatprep.subr.mxu0 0.0
    %404 = vmatpush2.xpose.msra.mxu0 0.0
    %405 = vmatprep.subr.mxu0 0.0
    %406 = vmatpush2.xpose.msra.mxu0 0.0
    %407 = vmatprep.subr.mxu0 0.0
    %408 = vmatpush2.xpose.msra.mxu0 0.0
    %409 = vmatprep.subr.mxu0 0.0
    %410 = vmatpush2.xpose.msra.mxu0 0.0
    %411 = vmatprep.subr.mxu0 0.0
    %412 = vmatpush2.xpose.msra.mxu0 0.0
    %413 = vmatprep.subr.mxu0 0.0
    %414 = vmatpush2.xpose.msra.mxu0 0.0
    %415 = vmatprep.subr.mxu0 0.0
    %416 = vmatpush2.xpose.msra.mxu0 0.0
    %417 = vmatprep.subr.mxu0 0.0
    %418 = vmatpush2.xpose.msra.mxu0 0.0
    %419 = vmatprep.subr.mxu0 0.0
    %420 = vmatpush2.xpose.msra.mxu0 0.0
    %421 = vmatprep.subr.mxu0 0.0
    %422 = vmatpush2.xpose.msra.mxu0 0.0
    %423 = vmatprep.subr.mxu0 0.0
    %424 = vmatpush2.xpose.msra.mxu0 0.0
    %425 = vmatprep.subr.mxu0 0.0
    %426 = vmatpush2.xpose.msra.mxu0 0.0
    %427 = vmatprep.subr.mxu0 0.0
    %428 = vmatpush2.xpose.msra.mxu0 0.0
    %429 = vmatprep.mubr.f32.mxu0 0.0
    %430 = vmatmul.mubr.f32.gmra.mxu0 %v202
    %v431 = vpop.f32.mrf.mxu0
    %v432 = vadd.f32 0.0, %v431
    %v433 = vpop.f32.mrf.mxu0
    %434 = vdwg.mxu0
    %v435 = vmul.f32 %v362, 0.35355338
    %v436 = vmul.f32 %v432, 0.35355338
    %v437 = vsel %vm285, 1, 0
    %vm438 = vcmp.eq.s32.totalorder %v437, 1
    %v439 = vsel %vm438, %v435, -1e+30
    %v440 = vsel %vm438, %v436, -1e+30
    %vm441 = vcmask 64512
    %v442 = vsel %vm441, %v439, -inf
    %443 = vmax.xlane.f32.xlu0 %v442
    %v444 = vpop.xlane.xlu0 %443
    %v445 = vsel %vm441, %v440, -inf
    %446 = vmax.xlane.f32.xlu0 %v445
    %v447 = vpop.xlane.xlu0 %446
    %v448 = vsub.f32 %v439, %v444
    %v449 = vsub.f32 %v440, %v447
    %v450 = vmul.f32 %v448, 1.442695
    %v451 = vpow.pop %v450
    %v452 = vmul.f32 %v449, 1.442695
    %v453 = vpow.pop %v452
    %v454 = vsel %vm441, %v451, 0.0
    %455 = vadd.xlane.f32.xlu0 %v454
    %v456 = vpop.xlane.xlu0 %455
    %v457 = vsel %vm441, %v453, 0.0
    %458 = vadd.xlane.f32.xlu0 %v457
    %v459 = vpop.xlane.xlu0 %458
    %v460 = vrcp.pop %v456
    %v461 = vrcp.pop %v459
    %v462 = vmul.f32 %v451, %v460
    %v463 = vmul.f32 %v453, %v461
    %vm464 = vcmp.ge.s32.totalorder %v284, 32
    %vm465 = vcmp.lt.s32.totalorder %v284, 64
    %vm466 = vmand %vm464, %vm465
    %v467 = vsel %vm466, 1, 0
    %vm468 = vcmp.eq.s32.totalorder %v467, 1
    %v469 = vsel %vm468, %v198, 0.0
    %v470 = vsel %vm468, %v204, 0.0
    %v471 = vsel %vm468, %v273, 0.0
    %v472 = vsel %vm468, %v278, 0.0
    %473 = vmatprep.subr.mxu0 0.0
    %474 = vmatpush1.xpose.msra.mxu0 0.0
    %475 = vmatprep.subr.mxu0 0.0
    %476 = vmatpush1.xpose.msra.mxu0 0.0
    %477 = vmatprep.subr.mxu0 0.0
    %478 = vmatpush1.xpose.msra.mxu0 0.0
    %479 = vmatprep.subr.mxu0 0.0
    %480 = vmatpush1.xpose.msra.mxu0 0.0
    %481 = vmatprep.subr.mxu0 0.0
    %482 = vmatpush1.xpose.msra.mxu0 0.0
    %483 = vmatprep.subr.mxu0 0.0
    %484 = vmatpush1.xpose.msra.mxu0 0.0
    %485 = vmatprep.subr.mxu0 0.0
    %486 = vmatpush1.xpose.msra.mxu0 0.0
    %487 = vmatprep.subr.mxu0 0.0
    %488 = vmatpush1.xpose.msra.mxu0 0.0
    %489 = vmatprep.subr.mxu0 0.0
    %490 = vmatpush1.xpose.msra.mxu0 0.0
    %491 = vmatprep.subr.mxu0 0.0
    %492 = vmatpush1.xpose.msra.mxu0 0.0
    %493 = vmatprep.subr.mxu0 0.0
    %494 = vmatpush1.xpose.msra.mxu0 0.0
    %495 = vmatprep.subr.mxu0 0.0
    %496 = vmatpush1.xpose.msra.mxu0 0.0
    %497 = vmatprep.subr.mxu0 0.0
    %498 = vmatpush1.xpose.msra.mxu0 0.0
    %499 = vmatprep.subr.mxu0 0.0
    %500 = vmatpush1.xpose.msra.mxu0 0.0
    %501 = vmatprep.subr.mxu0 0.0
    %502 = vmatpush1.xpose.msra.mxu0 0.0
    %503 = vmatprep.subr.mxu0 0.0
    %504 = vmatpush1.xpose.msra.mxu0 %v469
    %505 = vmatprep.subr.mxu0 0.0
    %506 = vmatpush2.xpose.msra.mxu0 0.0
    %507 = vmatprep.subr.mxu0 0.0
    %508 = vmatpush2.xpose.msra.mxu0 0.0
    %509 = vmatprep.subr.mxu0 0.0
    %510 = vmatpush2.xpose.msra.mxu0 0.0
    %511 = vmatprep.subr.mxu0 0.0
    %512 = vmatpush2.xpose.msra.mxu0 0.0
    %513 = vmatprep.subr.mxu0 0.0
    %514 = vmatpush2.xpose.msra.mxu0 0.0
    %515 = vmatprep.subr.mxu0 0.0
    %516 = vmatpush2.xpose.msra.mxu0 0.0
    %517 = vmatprep.subr.mxu0 0.0
    %518 = vmatpush2.xpose.msra.mxu0 0.0
    %519 = vmatprep.subr.mxu0 0.0
    %520 = vmatpush2.xpose.msra.mxu0 0.0
    %521 = vmatprep.subr.mxu0 0.0
    %522 = vmatpush2.xpose.msra.mxu0 0.0
    %523 = vmatprep.subr.mxu0 0.0
    %524 = vmatpush2.xpose.msra.mxu0 0.0
    %525 = vmatprep.subr.mxu0 0.0
    %526 = vmatpush2.xpose.msra.mxu0 0.0
    %527 = vmatprep.subr.mxu0 0.0
    %528 = vmatpush2.xpose.msra.mxu0 0.0
    %529 = vmatprep.subr.mxu0 0.0
    %530 = vmatpush2.xpose.msra.mxu0 0.0
    %531 = vmatprep.subr.mxu0 0.0
    %532 = vmatpush2.xpose.msra.mxu0 0.0
    %533 = vmatprep.subr.mxu0 0.0
    %534 = vmatpush2.xpose.msra.mxu0 0.0
    %535 = vmatprep.subr.mxu0 0.0
    %536 = vmatpush2.xpose.msra.mxu0 0.0
    %537 = vmatprep.mubr.f32.mxu0 0.0
    %538 = vmatmul.mubr.f32.gmra.mxu0 %v196
    %v539 = vpop.f32.mrf.mxu0
    %v540 = vadd.f32 0.0, %v539
    %v541 = vpop.f32.mrf.mxu0
    %542 = vdwg.mxu0
    %543 = vmatprep.subr.mxu0 0.0
    %544 = vmatpush1.xpose.msra.mxu0 0.0
    %545 = vmatprep.subr.mxu0 0.0
    %546 = vmatpush1.xpose.msra.mxu0 0.0
    %547 = vmatprep.subr.mxu0 0.0
    %548 = vmatpush1.xpose.msra.mxu0 0.0
    %549 = vmatprep.subr.mxu0 0.0
    %550 = vmatpush1.xpose.msra.mxu0 0.0
    %551 = vmatprep.subr.mxu0 0.0
    %552 = vmatpush1.xpose.msra.mxu0 0.0
    %553 = vmatprep.subr.mxu0 0.0
    %554 = vmatpush1.xpose.msra.mxu0 0.0
    %555 = vmatprep.subr.mxu0 0.0
    %556 = vmatpush1.xpose.msra.mxu0 0.0
    %557 = vmatprep.subr.mxu0 0.0
    %558 = vmatpush1.xpose.msra.mxu0 0.0
    %559 = vmatprep.subr.mxu0 0.0
    %560 = vmatpush1.xpose.msra.mxu0 0.0
    %561 = vmatprep.subr.mxu0 0.0
    %562 = vmatpush1.xpose.msra.mxu0 0.0
    %563 = vmatprep.subr.mxu0 0.0
    %564 = vmatpush1.xpose.msra.mxu0 0.0
    %565 = vmatprep.subr.mxu0 0.0
    %566 = vmatpush1.xpose.msra.mxu0 0.0
    %567 = vmatprep.subr.mxu0 0.0
    %568 = vmatpush1.xpose.msra.mxu0 0.0
    %569 = vmatprep.subr.mxu0 0.0
    %570 = vmatpush1.xpose.msra.mxu0 0.0
    %571 = vmatprep.subr.mxu0 0.0
    %572 = vmatpush1.xpose.msra.mxu0 0.0
    %573 = vmatprep.subr.mxu0 0.0
    %574 = vmatpush1.xpose.msra.mxu0 %v470
    %575 = vmatprep.subr.mxu0 0.0
    %576 = vmatpush2.xpose.msra.mxu0 0.0
    %577 = vmatprep.subr.mxu0 0.0
    %578 = vmatpush2.xpose.msra.mxu0 0.0
    %579 = vmatprep.subr.mxu0 0.0
    %580 = vmatpush2.xpose.msra.mxu0 0.0
    %581 = vmatprep.subr.mxu0 0.0
    %582 = vmatpush2.xpose.msra.mxu0 0.0
    %583 = vmatprep.subr.mxu0 0.0
    %584 = vmatpush2.xpose.msra.mxu0 0.0
    %585 = vmatprep.subr.mxu0 0.0
    %586 = vmatpush2.xpose.msra.mxu0 0.0
    %587 = vmatprep.subr.mxu0 0.0
    %588 = vmatpush2.xpose.msra.mxu0 0.0
    %589 = vmatprep.subr.mxu0 0.0
    %590 = vmatpush2.xpose.msra.mxu0 0.0
    %591 = vmatprep.subr.mxu0 0.0
    %592 = vmatpush2.xpose.msra.mxu0 0.0
    %593 = vmatprep.subr.mxu0 0.0
    %594 = vmatpush2.xpose.msra.mxu0 0.0
    %595 = vmatprep.subr.mxu0 0.0
    %596 = vmatpush2.xpose.msra.mxu0 0.0
    %597 = vmatprep.subr.mxu0 0.0
    %598 = vmatpush2.xpose.msra.mxu0 0.0
    %599 = vmatprep.subr.mxu0 0.0
    %600 = vmatpush2.xpose.msra.mxu0 0.0
    %601 = vmatprep.subr.mxu0 0.0
    %602 = vmatpush2.xpose.msra.mxu0 0.0
    %603 = vmatprep.subr.mxu0 0.0
    %604 = vmatpush2.xpose.msra.mxu0 0.0
    %605 = vmatprep.subr.mxu0 0.0
    %606 = vmatpush2.xpose.msra.mxu0 0.0
    %607 = vmatprep.mubr.f32.mxu0 0.0
    %608 = vmatmul.mubr.f32.gmra.mxu0 %v202
    %v609 = vpop.f32.mrf.mxu0
    %v610 = vadd.f32 0.0, %v609
    %v611 = vpop.f32.mrf.mxu0
    %612 = vdwg.mxu0
    %v613 = vmul.f32 %v540, 0.35355338
    %v614 = vmul.f32 %v610, 0.35355338
    %v615 = vsel %vm438, %v613, -1e+30
    %v616 = vsel %vm438, %v614, -1e+30
    %v617 = vsel %vm441, %v615, -inf
    %618 = vmax.xlane.f32.xlu0 %v617
    %v619 = vpop.xlane.xlu0 %618
    %v620 = vsel %vm441, %v616, -inf
    %621 = vmax.xlane.f32.xlu0 %v620
    %v622 = vpop.xlane.xlu0 %621
    %v623 = vsub.f32 %v615, %v619
    %v624 = vsub.f32 %v616, %v622
    %v625 = vmul.f32 %v623, 1.442695
    %v626 = vpow.pop %v625
    %v627 = vmul.f32 %v624, 1.442695
    %v628 = vpow.pop %v627
    %v629 = vsel %vm441, %v626, 0.0
    %630 = vadd.xlane.f32.xlu0 %v629
    %v631 = vpop.xlane.xlu0 %630
    %v632 = vsel %vm441, %v628, 0.0
    %633 = vadd.xlane.f32.xlu0 %v632
    %v634 = vpop.xlane.xlu0 %633
    %v635 = vrcp.pop %v631
    %v636 = vrcp.pop %v634
    %v637 = vmul.f32 %v626, %v635
    %v638 = vmul.f32 %v628, %v636
    %v640 = vsel %vm441, %v637, 0
    %642 = vmatprep.subr.mxu0 0.0
    %643 = vmatpush1.msra.mxu0 0.0
    %644 = vmatprep.subr.mxu0 0.0
    %645 = vmatpush1.msra.mxu0 0.0
    %646 = vmatprep.subr.mxu0 0.0
    %647 = vmatpush1.msra.mxu0 0.0
    %648 = vmatprep.subr.mxu0 0.0
    %649 = vmatpush1.msra.mxu0 0.0
    %650 = vmatprep.subr.mxu0 0.0
    %651 = vmatpush1.msra.mxu0 0.0
    %652 = vmatprep.subr.mxu0 0.0
    %653 = vmatpush1.msra.mxu0 0.0
    %654 = vmatprep.subr.mxu0 0.0
    %655 = vmatpush1.msra.mxu0 0.0
    %656 = vmatprep.subr.mxu0 0.0
    %657 = vmatpush1.msra.mxu0 0.0
    %658 = vmatprep.subr.mxu0 0.0
    %659 = vmatpush1.msra.mxu0 0.0
    %660 = vmatprep.subr.mxu0 0.0
    %661 = vmatpush1.msra.mxu0 0.0
    %662 = vmatprep.subr.mxu0 0.0
    %663 = vmatpush1.msra.mxu0 0.0
    %664 = vmatprep.subr.mxu0 0.0
    %665 = vmatpush1.msra.mxu0 0.0
    %666 = vmatprep.subr.mxu0 0.0
    %667 = vmatpush1.msra.mxu0 0.0
    %668 = vmatprep.subr.mxu0 0.0
    %669 = vmatpush1.msra.mxu0 0.0
    %670 = vmatprep.subr.mxu0 0.0
    %671 = vmatpush1.msra.mxu0 0.0
    %672 = vmatprep.subr.mxu0 0.0
    %673 = vmatpush1.msra.mxu0 %v471
    %674 = vmatprep.subr.mxu0 0.0
    %675 = vmatpush2.msra.mxu0 0.0
    %676 = vmatprep.subr.mxu0 0.0
    %677 = vmatpush2.msra.mxu0 0.0
    %678 = vmatprep.subr.mxu0 0.0
    %679 = vmatpush2.msra.mxu0 0.0
    %680 = vmatprep.subr.mxu0 0.0
    %681 = vmatpush2.msra.mxu0 0.0
    %682 = vmatprep.subr.mxu0 0.0
    %683 = vmatpush2.msra.mxu0 0.0
    %684 = vmatprep.subr.mxu0 0.0
    %685 = vmatpush2.msra.mxu0 0.0
    %686 = vmatprep.subr.mxu0 0.0
    %687 = vmatpush2.msra.mxu0 0.0
    %688 = vmatprep.subr.mxu0 0.0
    %689 = vmatpush2.msra.mxu0 0.0
    %690 = vmatprep.subr.mxu0 0.0
    %691 = vmatpush2.msra.mxu0 0.0
    %692 = vmatprep.subr.mxu0 0.0
    %693 = vmatpush2.msra.mxu0 0.0
    %694 = vmatprep.subr.mxu0 0.0
    %695 = vmatpush2.msra.mxu0 0.0
    %696 = vmatprep.subr.mxu0 0.0
    %697 = vmatpush2.msra.mxu0 0.0
    %698 = vmatprep.subr.mxu0 0.0
    %699 = vmatpush2.msra.mxu0 0.0
    %700 = vmatprep.subr.mxu0 0.0
    %701 = vmatpush2.msra.mxu0 0.0
    %702 = vmatprep.subr.mxu0 0.0
    %703 = vmatpush2.msra.mxu0 0.0
    %704 = vmatprep.subr.mxu0 0.0
    %705 = vmatpush2.msra.mxu0 0.0
    %706 = vmatprep.mubr.f32.mxu0 0.0
    %707 = vmatmul.mubr.f32.gmra.mxu0 %v640
    %v708 = vpop.f32.mrf.mxu0
    %v709 = vadd.f32 0.0, %v708
    %v710 = vpop.f32.mrf.mxu0
    %711 = vdwg.mxu0
    %v713 = vsel %vm441, %v638, 0
    %715 = vmatprep.subr.mxu0 0.0
    %716 = vmatpush1.msra.mxu0 0.0
    %717 = vmatprep.subr.mxu0 0.0
    %718 = vmatpush1.msra.mxu0 0.0
    %719 = vmatprep.subr.mxu0 0.0
    %720 = vmatpush1.msra.mxu0 0.0
    %721 = vmatprep.subr.mxu0 0.0
    %722 = vmatpush1.msra.mxu0 0.0
    %723 = vmatprep.subr.mxu0 0.0
    %724 = vmatpush1.msra.mxu0 0.0
    %725 = vmatprep.subr.mxu0 0.0
    %726 = vmatpush1.msra.mxu0 0.0
    %727 = vmatprep.subr.mxu0 0.0
    %728 = vmatpush1.msra.mxu0 0.0
    %729 = vmatprep.subr.mxu0 0.0
    %730 = vmatpush1.msra.mxu0 0.0
    %731 = vmatprep.subr.mxu0 0.0
    %732 = vmatpush1.msra.mxu0 0.0
    %733 = vmatprep.subr.mxu0 0.0
    %734 = vmatpush1.msra.mxu0 0.0
    %735 = vmatprep.subr.mxu0 0.0
    %736 = vmatpush1.msra.mxu0 0.0
    %737 = vmatprep.subr.mxu0 0.0
    %738 = vmatpush1.msra.mxu0 0.0
    %739 = vmatprep.subr.mxu0 0.0
    %740 = vmatpush1.msra.mxu0 0.0
    %741 = vmatprep.subr.mxu0 0.0
    %742 = vmatpush1.msra.mxu0 0.0
    %743 = vmatprep.subr.mxu0 0.0
    %744 = vmatpush1.msra.mxu0 0.0
    %745 = vmatprep.subr.mxu0 0.0
    %746 = vmatpush1.msra.mxu0 %v472
    %747 = vmatprep.subr.mxu0 0.0
    %748 = vmatpush2.msra.mxu0 0.0
    %749 = vmatprep.subr.mxu0 0.0
    %750 = vmatpush2.msra.mxu0 0.0
    %751 = vmatprep.subr.mxu0 0.0
    %752 = vmatpush2.msra.mxu0 0.0
    %753 = vmatprep.subr.mxu0 0.0
    %754 = vmatpush2.msra.mxu0 0.0
    %755 = vmatprep.subr.mxu0 0.0
    %756 = vmatpush2.msra.mxu0 0.0
    %757 = vmatprep.subr.mxu0 0.0
    %758 = vmatpush2.msra.mxu0 0.0
    %759 = vmatprep.subr.mxu0 0.0
    %760 = vmatpush2.msra.mxu0 0.0
    %761 = vmatprep.subr.mxu0 0.0
    %762 = vmatpush2.msra.mxu0 0.0
    %763 = vmatprep.subr.mxu0 0.0
    %764 = vmatpush2.msra.mxu0 0.0
    %765 = vmatprep.subr.mxu0 0.0
    %766 = vmatpush2.msra.mxu0 0.0
    %767 = vmatprep.subr.mxu0 0.0
    %768 = vmatpush2.msra.mxu0 0.0
    %769 = vmatprep.subr.mxu0 0.0
    %770 = vmatpush2.msra.mxu0 0.0
    %771 = vmatprep.subr.mxu0 0.0
    %772 = vmatpush2.msra.mxu0 0.0
    %773 = vmatprep.subr.mxu0 0.0
    %774 = vmatpush2.msra.mxu0 0.0
    %775 = vmatprep.subr.mxu0 0.0
    %776 = vmatpush2.msra.mxu0 0.0
    %777 = vmatprep.subr.mxu0 0.0
    %778 = vmatpush2.msra.mxu0 0.0
    %779 = vmatprep.mubr.f32.mxu0 0.0
    %780 = vmatmul.mubr.f32.gmra.mxu0 %v713
    %v781 = vpop.f32.mrf.mxu0
    %v782 = vadd.f32 0.0, %v781
    %v783 = vpop.f32.mrf.mxu0
    %784 = vdwg.mxu0
    %v786 = vsel %vm441, %v462, 0
    %788 = vmatprep.subr.mxu0 0.0
    %789 = vmatpush1.msra.mxu0 0.0
    %790 = vmatprep.subr.mxu0 0.0
    %791 = vmatpush1.msra.mxu0 0.0
    %792 = vmatprep.subr.mxu0 0.0
    %793 = vmatpush1.msra.mxu0 0.0
    %794 = vmatprep.subr.mxu0 0.0
    %795 = vmatpush1.msra.mxu0 0.0
    %796 = vmatprep.subr.mxu0 0.0
    %797 = vmatpush1.msra.mxu0 0.0
    %798 = vmatprep.subr.mxu0 0.0
    %799 = vmatpush1.msra.mxu0 0.0
    %800 = vmatprep.subr.mxu0 0.0
    %801 = vmatpush1.msra.mxu0 0.0
    %802 = vmatprep.subr.mxu0 0.0
    %803 = vmatpush1.msra.mxu0 0.0
    %804 = vmatprep.subr.mxu0 0.0
    %805 = vmatpush1.msra.mxu0 0.0
    %806 = vmatprep.subr.mxu0 0.0
    %807 = vmatpush1.msra.mxu0 0.0
    %808 = vmatprep.subr.mxu0 0.0
    %809 = vmatpush1.msra.mxu0 0.0
    %810 = vmatprep.subr.mxu0 0.0
    %811 = vmatpush1.msra.mxu0 0.0
    %812 = vmatprep.subr.mxu0 0.0
    %813 = vmatpush1.msra.mxu0 0.0
    %814 = vmatprep.subr.mxu0 0.0
    %815 = vmatpush1.msra.mxu0 0.0
    %816 = vmatprep.subr.mxu0 0.0
    %817 = vmatpush1.msra.mxu0 0.0
    %818 = vmatprep.subr.mxu0 0.0
    %819 = vmatpush1.msra.mxu0 %v293
    %820 = vmatprep.subr.mxu0 0.0
    %821 = vmatpush2.msra.mxu0 0.0
    %822 = vmatprep.subr.mxu0 0.0
    %823 = vmatpush2.msra.mxu0 0.0
    %824 = vmatprep.subr.mxu0 0.0
    %825 = vmatpush2.msra.mxu0 0.0
    %826 = vmatprep.subr.mxu0 0.0
    %827 = vmatpush2.msra.mxu0 0.0
    %828 = vmatprep.subr.mxu0 0.0
    %829 = vmatpush2.msra.mxu0 0.0
    %830 = vmatprep.subr.mxu0 0.0
    %831 = vmatpush2.msra.mxu0 0.0
    %832 = vmatprep.subr.mxu0 0.0
    %833 = vmatpush2.msra.mxu0 0.0
    %834 = vmatprep.subr.mxu0 0.0
    %835 = vmatpush2.msra.mxu0 0.0
    %836 = vmatprep.subr.mxu0 0.0
    %837 = vmatpush2.msra.mxu0 0.0
    %838 = vmatprep.subr.mxu0 0.0
    %839 = vmatpush2.msra.mxu0 0.0
    %840 = vmatprep.subr.mxu0 0.0
    %841 = vmatpush2.msra.mxu0 0.0
    %842 = vmatprep.subr.mxu0 0.0
    %843 = vmatpush2.msra.mxu0 0.0
    %844 = vmatprep.subr.mxu0 0.0
    %845 = vmatpush2.msra.mxu0 0.0
    %846 = vmatprep.subr.mxu0 0.0
    %847 = vmatpush2.msra.mxu0 0.0
    %848 = vmatprep.subr.mxu0 0.0
    %849 = vmatpush2.msra.mxu0 0.0
    %850 = vmatprep.subr.mxu0 0.0
    %851 = vmatpush2.msra.mxu0 0.0
    %852 = vmatprep.mubr.f32.mxu0 0.0
    %853 = vmatmul.mubr.f32.gmra.mxu0 %v786
    %v854 = vpop.f32.mrf.mxu0
    %v855 = vadd.f32 %v709, %v854
    %v856 = vpop.f32.mrf.mxu0
    %857 = vdwg.mxu0
    %v859 = vsel %vm441, %v463, 0
    %861 = vmatprep.subr.mxu0 0.0
    %862 = vmatpush1.msra.mxu0 0.0
    %863 = vmatprep.subr.mxu0 0.0
    %864 = vmatpush1.msra.mxu0 0.0
    %865 = vmatprep.subr.mxu0 0.0
    %866 = vmatpush1.msra.mxu0 0.0
    %867 = vmatprep.subr.mxu0 0.0
    %868 = vmatpush1.msra.mxu0 0.0
    %869 = vmatprep.subr.mxu0 0.0
    %870 = vmatpush1.msra.mxu0 0.0
    %871 = vmatprep.subr.mxu0 0.0
    %872 = vmatpush1.msra.mxu0 0.0
    %873 = vmatprep.subr.mxu0 0.0
    %874 = vmatpush1.msra.mxu0 0.0
    %875 = vmatprep.subr.mxu0 0.0
    %876 = vmatpush1.msra.mxu0 0.0
    %877 = vmatprep.subr.mxu0 0.0
    %878 = vmatpush1.msra.mxu0 0.0
    %879 = vmatprep.subr.mxu0 0.0
    %880 = vmatpush1.msra.mxu0 0.0
    %881 = vmatprep.subr.mxu0 0.0
    %882 = vmatpush1.msra.mxu0 0.0
    %883 = vmatprep.subr.mxu0 0.0
    %884 = vmatpush1.msra.mxu0 0.0
    %885 = vmatprep.subr.mxu0 0.0
    %886 = vmatpush1.msra.mxu0 0.0
    %887 = vmatprep.subr.mxu0 0.0
    %888 = vmatpush1.msra.mxu0 0.0
    %889 = vmatprep.subr.mxu0 0.0
    %890 = vmatpush1.msra.mxu0 0.0
    %891 = vmatprep.subr.mxu0 0.0
    %892 = vmatpush1.msra.mxu0 %v294
    %893 = vmatprep.subr.mxu0 0.0
    %894 = vmatpush2.msra.mxu0 0.0
    %895 = vmatprep.subr.mxu0 0.0
    %896 = vmatpush2.msra.mxu0 0.0
    %897 = vmatprep.subr.mxu0 0.0
    %898 = vmatpush2.msra.mxu0 0.0
    %899 = vmatprep.subr.mxu0 0.0
    %900 = vmatpush2.msra.mxu0 0.0
    %901 = vmatprep.subr.mxu0 0.0
    %902 = vmatpush2.msra.mxu0 0.0
    %903 = vmatprep.subr.mxu0 0.0
    %904 = vmatpush2.msra.mxu0 0.0
    %905 = vmatprep.subr.mxu0 0.0
    %906 = vmatpush2.msra.mxu0 0.0
    %907 = vmatprep.subr.mxu0 0.0
    %908 = vmatpush2.msra.mxu0 0.0
    %909 = vmatprep.subr.mxu0 0.0
    %910 = vmatpush2.msra.mxu0 0.0
    %911 = vmatprep.subr.mxu0 0.0
    %912 = vmatpush2.msra.mxu0 0.0
    %913 = vmatprep.subr.mxu0 0.0
    %914 = vmatpush2.msra.mxu0 0.0
    %915 = vmatprep.subr.mxu0 0.0
    %916 = vmatpush2.msra.mxu0 0.0
    %917 = vmatprep.subr.mxu0 0.0
    %918 = vmatpush2.msra.mxu0 0.0
    %919 = vmatprep.subr.mxu0 0.0
    %920 = vmatpush2.msra.mxu0 0.0
    %921 = vmatprep.subr.mxu0 0.0
    %922 = vmatpush2.msra.mxu0 0.0
    %923 = vmatprep.subr.mxu0 0.0
    %924 = vmatpush2.msra.mxu0 0.0
    %925 = vmatprep.mubr.f32.mxu0 0.0
    %926 = vmatmul.mubr.f32.gmra.mxu0 %v859
    %v927 = vpop.f32.mrf.mxu0
    %v928 = vadd.f32 %v782, %v927
    %v929 = vpop.f32.mrf.mxu0
    %930 = vdwg.mxu0
    %vm931 = vcmp.ge.s32.totalorder %v284, 64
    %vm932 = vcmp.lt.s32.totalorder %v284, 96
    %vm933 = vmand %vm931, %vm932
    %v934 = vsel %vm933, 1, 0
    %vm935 = vcmp.eq.s32.totalorder %v934, 1
    %v936 = vsel %vm935, %v198, 0.0
    %v937 = vsel %vm935, %v204, 0.0
    %v938 = vsel %vm935, %v273, 0.0
    %v939 = vsel %vm935, %v278, 0.0
    %940 = vmatprep.subr.mxu0 0.0
    %941 = vmatpush1.xpose.msra.mxu0 0.0
    %942 = vmatprep.subr.mxu0 0.0
    %943 = vmatpush1.xpose.msra.mxu0 0.0
    %944 = vmatprep.subr.mxu0 0.0
    %945 = vmatpush1.xpose.msra.mxu0 0.0
    %946 = vmatprep.subr.mxu0 0.0
    %947 = vmatpush1.xpose.msra.mxu0 0.0
    %948 = vmatprep.subr.mxu0 0.0
    %949 = vmatpush1.xpose.msra.mxu0 0.0
    %950 = vmatprep.subr.mxu0 0.0
    %951 = vmatpush1.xpose.msra.mxu0 0.0
    %952 = vmatprep.subr.mxu0 0.0
    %953 = vmatpush1.xpose.msra.mxu0 0.0
    %954 = vmatprep.subr.mxu0 0.0
    %955 = vmatpush1.xpose.msra.mxu0 0.0
    %956 = vmatprep.subr.mxu0 0.0
    %957 = vmatpush1.xpose.msra.mxu0 0.0
    %958 = vmatprep.subr.mxu0 0.0
    %959 = vmatpush1.xpose.msra.mxu0 0.0
    %960 = vmatprep.subr.mxu0 0.0
    %961 = vmatpush1.xpose.msra.mxu0 0.0
    %962 = vmatprep.subr.mxu0 0.0
    %963 = vmatpush1.xpose.msra.mxu0 0.0
    %964 = vmatprep.subr.mxu0 0.0
    %965 = vmatpush1.xpose.msra.mxu0 0.0
    %966 = vmatprep.subr.mxu0 0.0
    %967 = vmatpush1.xpose.msra.mxu0 0.0
    %968 = vmatprep.subr.mxu0 0.0
    %969 = vmatpush1.xpose.msra.mxu0 0.0
    %970 = vmatprep.subr.mxu0 0.0
    %971 = vmatpush1.xpose.msra.mxu0 %v936
    %972 = vmatprep.subr.mxu0 0.0
    %973 = vmatpush2.xpose.msra.mxu0 0.0
    %974 = vmatprep.subr.mxu0 0.0
    %975 = vmatpush2.xpose.msra.mxu0 0.0
    %976 = vmatprep.subr.mxu0 0.0
    %977 = vmatpush2.xpose.msra.mxu0 0.0
    %978 = vmatprep.subr.mxu0 0.0
    %979 = vmatpush2.xpose.msra.mxu0 0.0
    %980 = vmatprep.subr.mxu0 0.0
    %981 = vmatpush2.xpose.msra.mxu0 0.0
    %982 = vmatprep.subr.mxu0 0.0
    %983 = vmatpush2.xpose.msra.mxu0 0.0
    %984 = vmatprep.subr.mxu0 0.0
    %985 = vmatpush2.xpose.msra.mxu0 0.0
    %986 = vmatprep.subr.mxu0 0.0
    %987 = vmatpush2.xpose.msra.mxu0 0.0
    %988 = vmatprep.subr.mxu0 0.0
    %989 = vmatpush2.xpose.msra.mxu0 0.0
    %990 = vmatprep.subr.mxu0 0.0
    %991 = vmatpush2.xpose.msra.mxu0 0.0
    %992 = vmatprep.subr.mxu0 0.0
    %993 = vmatpush2.xpose.msra.mxu0 0.0
    %994 = vmatprep.subr.mxu0 0.0
    %995 = vmatpush2.xpose.msra.mxu0 0.0
    %996 = vmatprep.subr.mxu0 0.0
    %997 = vmatpush2.xpose.msra.mxu0 0.0
    %998 = vmatprep.subr.mxu0 0.0
    %999 = vmatpush2.xpose.msra.mxu0 0.0
    %1000 = vmatprep.subr.mxu0 0.0
    %1001 = vmatpush2.xpose.msra.mxu0 0.0
    %1002 = vmatprep.subr.mxu0 0.0
    %1003 = vmatpush2.xpose.msra.mxu0 0.0
    %1004 = vmatprep.mubr.f32.mxu0 0.0
    %1005 = vmatmul.mubr.f32.gmra.mxu0 %v196
    %v1006 = vpop.f32.mrf.mxu0
    %v1007 = vadd.f32 0.0, %v1006
    %v1008 = vpop.f32.mrf.mxu0
    %1009 = vdwg.mxu0
    %1010 = vmatprep.subr.mxu0 0.0
    %1011 = vmatpush1.xpose.msra.mxu0 0.0
    %1012 = vmatprep.subr.mxu0 0.0
    %1013 = vmatpush1.xpose.msra.mxu0 0.0
    %1014 = vmatprep.subr.mxu0 0.0
    %1015 = vmatpush1.xpose.msra.mxu0 0.0
    %1016 = vmatprep.subr.mxu0 0.0
    %1017 = vmatpush1.xpose.msra.mxu0 0.0
    %1018 = vmatprep.subr.mxu0 0.0
    %1019 = vmatpush1.xpose.msra.mxu0 0.0
    %1020 = vmatprep.subr.mxu0 0.0
    %1021 = vmatpush1.xpose.msra.mxu0 0.0
    %1022 = vmatprep.subr.mxu0 0.0
    %1023 = vmatpush1.xpose.msra.mxu0 0.0
    %1024 = vmatprep.subr.mxu0 0.0
    %1025 = vmatpush1.xpose.msra.mxu0 0.0
    %1026 = vmatprep.subr.mxu0 0.0
    %1027 = vmatpush1.xpose.msra.mxu0 0.0
    %1028 = vmatprep.subr.mxu0 0.0
    %1029 = vmatpush1.xpose.msra.mxu0 0.0
    %1030 = vmatprep.subr.mxu0 0.0
    %1031 = vmatpush1.xpose.msra.mxu0 0.0
    %1032 = vmatprep.subr.mxu0 0.0
    %1033 = vmatpush1.xpose.msra.mxu0 0.0
    %1034 = vmatprep.subr.mxu0 0.0
    %1035 = vmatpush1.xpose.msra.mxu0 0.0
    %1036 = vmatprep.subr.mxu0 0.0
    %1037 = vmatpush1.xpose.msra.mxu0 0.0
    %1038 = vmatprep.subr.mxu0 0.0
    %1039 = vmatpush1.xpose.msra.mxu0 0.0
    %1040 = vmatprep.subr.mxu0 0.0
    %1041 = vmatpush1.xpose.msra.mxu0 %v937
    %1042 = vmatprep.subr.mxu0 0.0
    %1043 = vmatpush2.xpose.msra.mxu0 0.0
    %1044 = vmatprep.subr.mxu0 0.0
    %1045 = vmatpush2.xpose.msra.mxu0 0.0
    %1046 = vmatprep.subr.mxu0 0.0
    %1047 = vmatpush2.xpose.msra.mxu0 0.0
    %1048 = vmatprep.subr.mxu0 0.0
    %1049 = vmatpush2.xpose.msra.mxu0 0.0
    %1050 = vmatprep.subr.mxu0 0.0
    %1051 = vmatpush2.xpose.msra.mxu0 0.0
    %1052 = vmatprep.subr.mxu0 0.0
    %1053 = vmatpush2.xpose.msra.mxu0 0.0
    %1054 = vmatprep.subr.mxu0 0.0
    %1055 = vmatpush2.xpose.msra.mxu0 0.0
    %1056 = vmatprep.subr.mxu0 0.0
    %1057 = vmatpush2.xpose.msra.mxu0 0.0
    %1058 = vmatprep.subr.mxu0 0.0
    %1059 = vmatpush2.xpose.msra.mxu0 0.0
    %1060 = vmatprep.subr.mxu0 0.0
    %1061 = vmatpush2.xpose.msra.mxu0 0.0
    %1062 = vmatprep.subr.mxu0 0.0
    %1063 = vmatpush2.xpose.msra.mxu0 0.0
    %1064 = vmatprep.subr.mxu0 0.0
    %1065 = vmatpush2.xpose.msra.mxu0 0.0
    %1066 = vmatprep.subr.mxu0 0.0
    %1067 = vmatpush2.xpose.msra.mxu0 0.0
    %1068 = vmatprep.subr.mxu0 0.0
    %1069 = vmatpush2.xpose.msra.mxu0 0.0
    %1070 = vmatprep.subr.mxu0 0.0
    %1071 = vmatpush2.xpose.msra.mxu0 0.0
    %1072 = vmatprep.subr.mxu0 0.0
    %1073 = vmatpush2.xpose.msra.mxu0 0.0
    %1074 = vmatprep.mubr.f32.mxu0 0.0
    %1075 = vmatmul.mubr.f32.gmra.mxu0 %v202
    %v1076 = vpop.f32.mrf.mxu0
    %v1077 = vadd.f32 0.0, %v1076
    %v1078 = vpop.f32.mrf.mxu0
    %1079 = vdwg.mxu0
    %v1080 = vmul.f32 %v1007, 0.35355338
    %v1081 = vmul.f32 %v1077, 0.35355338
    %v1082 = vsel %vm438, %v1080, -1e+30
    %v1083 = vsel %vm438, %v1081, -1e+30
    %v1084 = vsel %vm441, %v1082, -inf
    %1085 = vmax.xlane.f32.xlu0 %v1084
    %v1086 = vpop.xlane.xlu0 %1085
    %v1087 = vsel %vm441, %v1083, -inf
    %1088 = vmax.xlane.f32.xlu0 %v1087
    %v1089 = vpop.xlane.xlu0 %1088
    %v1090 = vsub.f32 %v1082, %v1086
    %v1091 = vsub.f32 %v1083, %v1089
    %v1092 = vmul.f32 %v1090, 1.442695
    %v1093 = vpow.pop %v1092
    %v1094 = vmul.f32 %v1091, 1.442695
    %v1095 = vpow.pop %v1094
    %v1096 = vsel %vm441, %v1093, 0.0
    %1097 = vadd.xlane.f32.xlu0 %v1096
    %v1098 = vpop.xlane.xlu0 %1097
    %v1099 = vsel %vm441, %v1095, 0.0
    %1100 = vadd.xlane.f32.xlu0 %v1099
    %v1101 = vpop.xlane.xlu0 %1100
    %v1102 = vrcp.pop %v1098
    %v1103 = vrcp.pop %v1101
    %v1104 = vmul.f32 %v1093, %v1102
    %v1105 = vmul.f32 %v1095, %v1103
    %v1107 = vsel %vm441, %v1104, 0
    %1109 = vmatprep.subr.mxu0 0.0
    %1110 = vmatpush1.msra.mxu0 0.0
    %1111 = vmatprep.subr.mxu0 0.0
    %1112 = vmatpush1.msra.mxu0 0.0
    %1113 = vmatprep.subr.mxu0 0.0
    %1114 = vmatpush1.msra.mxu0 0.0
    %1115 = vmatprep.subr.mxu0 0.0
    %1116 = vmatpush1.msra.mxu0 0.0
    %1117 = vmatprep.subr.mxu0 0.0
    %1118 = vmatpush1.msra.mxu0 0.0
    %1119 = vmatprep.subr.mxu0 0.0
    %1120 = vmatpush1.msra.mxu0 0.0
    %1121 = vmatprep.subr.mxu0 0.0
    %1122 = vmatpush1.msra.mxu0 0.0
    %1123 = vmatprep.subr.mxu0 0.0
    %1124 = vmatpush1.msra.mxu0 0.0
    %1125 = vmatprep.subr.mxu0 0.0
    %1126 = vmatpush1.msra.mxu0 0.0
    %1127 = vmatprep.subr.mxu0 0.0
    %1128 = vmatpush1.msra.mxu0 0.0
    %1129 = vmatprep.subr.mxu0 0.0
    %1130 = vmatpush1.msra.mxu0 0.0
    %1131 = vmatprep.subr.mxu0 0.0
    %1132 = vmatpush1.msra.mxu0 0.0
    %1133 = vmatprep.subr.mxu0 0.0
    %1134 = vmatpush1.msra.mxu0 0.0
    %1135 = vmatprep.subr.mxu0 0.0
    %1136 = vmatpush1.msra.mxu0 0.0
    %1137 = vmatprep.subr.mxu0 0.0
    %1138 = vmatpush1.msra.mxu0 0.0
    %1139 = vmatprep.subr.mxu0 0.0
    %1140 = vmatpush1.msra.mxu0 %v938
    %1141 = vmatprep.subr.mxu0 0.0
    %1142 = vmatpush2.msra.mxu0 0.0
    %1143 = vmatprep.subr.mxu0 0.0
    %1144 = vmatpush2.msra.mxu0 0.0
    %1145 = vmatprep.subr.mxu0 0.0
    %1146 = vmatpush2.msra.mxu0 0.0
    %1147 = vmatprep.subr.mxu0 0.0
    %1148 = vmatpush2.msra.mxu0 0.0
    %1149 = vmatprep.subr.mxu0 0.0
    %1150 = vmatpush2.msra.mxu0 0.0
    %1151 = vmatprep.subr.mxu0 0.0
    %1152 = vmatpush2.msra.mxu0 0.0
    %1153 = vmatprep.subr.mxu0 0.0
    %1154 = vmatpush2.msra.mxu0 0.0
    %1155 = vmatprep.subr.mxu0 0.0
    %1156 = vmatpush2.msra.mxu0 0.0
    %1157 = vmatprep.subr.mxu0 0.0
    %1158 = vmatpush2.msra.mxu0 0.0
    %1159 = vmatprep.subr.mxu0 0.0
    %1160 = vmatpush2.msra.mxu0 0.0
    %1161 = vmatprep.subr.mxu0 0.0
    %1162 = vmatpush2.msra.mxu0 0.0
    %1163 = vmatprep.subr.mxu0 0.0
    %1164 = vmatpush2.msra.mxu0 0.0
    %1165 = vmatprep.subr.mxu0 0.0
    %1166 = vmatpush2.msra.mxu0 0.0
    %1167 = vmatprep.subr.mxu0 0.0
    %1168 = vmatpush2.msra.mxu0 0.0
    %1169 = vmatprep.subr.mxu0 0.0
    %1170 = vmatpush2.msra.mxu0 0.0
    %1171 = vmatprep.subr.mxu0 0.0
    %1172 = vmatpush2.msra.mxu0 0.0
    %1173 = vmatprep.mubr.f32.mxu0 0.0
    %1174 = vmatmul.mubr.f32.gmra.mxu0 %v1107
    %v1175 = vpop.f32.mrf.mxu0
    %v1176 = vadd.f32 0.0, %v1175
    %v1177 = vpop.f32.mrf.mxu0
    %1178 = vdwg.mxu0
    %v1180 = vsel %vm441, %v1105, 0
    %1182 = vmatprep.subr.mxu0 0.0
    %1183 = vmatpush1.msra.mxu0 0.0
    %1184 = vmatprep.subr.mxu0 0.0
    %1185 = vmatpush1.msra.mxu0 0.0
    %1186 = vmatprep.subr.mxu0 0.0
    %1187 = vmatpush1.msra.mxu0 0.0
    %1188 = vmatprep.subr.mxu0 0.0
    %1189 = vmatpush1.msra.mxu0 0.0
    %1190 = vmatprep.subr.mxu0 0.0
    %1191 = vmatpush1.msra.mxu0 0.0
    %1192 = vmatprep.subr.mxu0 0.0
    %1193 = vmatpush1.msra.mxu0 0.0
    %1194 = vmatprep.subr.mxu0 0.0
    %1195 = vmatpush1.msra.mxu0 0.0
    %1196 = vmatprep.subr.mxu0 0.0
    %1197 = vmatpush1.msra.mxu0 0.0
    %1198 = vmatprep.subr.mxu0 0.0
    %1199 = vmatpush1.msra.mxu0 0.0
    %1200 = vmatprep.subr.mxu0 0.0
    %1201 = vmatpush1.msra.mxu0 0.0
    %1202 = vmatprep.subr.mxu0 0.0
    %1203 = vmatpush1.msra.mxu0 0.0
    %1204 = vmatprep.subr.mxu0 0.0
    %1205 = vmatpush1.msra.mxu0 0.0
    %1206 = vmatprep.subr.mxu0 0.0
    %1207 = vmatpush1.msra.mxu0 0.0
    %1208 = vmatprep.subr.mxu0 0.0
    %1209 = vmatpush1.msra.mxu0 0.0
    %1210 = vmatprep.subr.mxu0 0.0
    %1211 = vmatpush1.msra.mxu0 0.0
    %1212 = vmatprep.subr.mxu0 0.0
    %1213 = vmatpush1.msra.mxu0 %v939
    %1214 = vmatprep.subr.mxu0 0.0
    %1215 = vmatpush2.msra.mxu0 0.0
    %1216 = vmatprep.subr.mxu0 0.0
    %1217 = vmatpush2.msra.mxu0 0.0
    %1218 = vmatprep.subr.mxu0 0.0
    %1219 = vmatpush2.msra.mxu0 0.0
    %1220 = vmatprep.subr.mxu0 0.0
    %1221 = vmatpush2.msra.mxu0 0.0
    %1222 = vmatprep.subr.mxu0 0.0
    %1223 = vmatpush2.msra.mxu0 0.0
    %1224 = vmatprep.subr.mxu0 0.0
    %1225 = vmatpush2.msra.mxu0 0.0
    %1226 = vmatprep.subr.mxu0 0.0
    %1227 = vmatpush2.msra.mxu0 0.0
    %1228 = vmatprep.subr.mxu0 0.0
    %1229 = vmatpush2.msra.mxu0 0.0
    %1230 = vmatprep.subr.mxu0 0.0
    %1231 = vmatpush2.msra.mxu0 0.0
    %1232 = vmatprep.subr.mxu0 0.0
    %1233 = vmatpush2.msra.mxu0 0.0
    %1234 = vmatprep.subr.mxu0 0.0
    %1235 = vmatpush2.msra.mxu0 0.0
    %1236 = vmatprep.subr.mxu0 0.0
    %1237 = vmatpush2.msra.mxu0 0.0
    %1238 = vmatprep.subr.mxu0 0.0
    %1239 = vmatpush2.msra.mxu0 0.0
    %1240 = vmatprep.subr.mxu0 0.0
    %1241 = vmatpush2.msra.mxu0 0.0
    %1242 = vmatprep.subr.mxu0 0.0
    %1243 = vmatpush2.msra.mxu0 0.0
    %1244 = vmatprep.subr.mxu0 0.0
    %1245 = vmatpush2.msra.mxu0 0.0
    %1246 = vmatprep.mubr.f32.mxu0 0.0
    %1247 = vmatmul.mubr.f32.gmra.mxu0 %v1180
    %v1248 = vpop.f32.mrf.mxu0
    %v1249 = vadd.f32 0.0, %v1248
    %v1250 = vpop.f32.mrf.mxu0
    %1251 = vdwg.mxu0
    %v1252 = vadd.f32 %v855, %v1176
    %v1253 = vadd.f32 %v928, %v1249
    %vm1254 = vcmp.ge.s32.totalorder %v284, 96
    %vm1255 = vcmp.lt.s32.totalorder %v284, 128
    %vm1256 = vmand %vm1254, %vm1255
    %v1257 = vsel %vm1256, 1, 0
    %vm1258 = vcmp.eq.s32.totalorder %v1257, 1
    %v1259 = vsel %vm1258, %v198, 0.0
    %v1260 = vsel %vm1258, %v204, 0.0
    %v1261 = vsel %vm1258, %v273, 0.0
    %v1262 = vsel %vm1258, %v278, 0.0
    %1263 = vmatprep.subr.mxu0 0.0
    %1264 = vmatpush1.xpose.msra.mxu0 0.0
    %1265 = vmatprep.subr.mxu0 0.0
    %1266 = vmatpush1.xpose.msra.mxu0 0.0
    %1267 = vmatprep.subr.mxu0 0.0
    %1268 = vmatpush1.xpose.msra.mxu0 0.0
    %1269 = vmatprep.subr.mxu0 0.0
    %1270 = vmatpush1.xpose.msra.mxu0 0.0
    %1271 = vmatprep.subr.mxu0 0.0
    %1272 = vmatpush1.xpose.msra.mxu0 0.0
    %1273 = vmatprep.subr.mxu0 0.0
    %1274 = vmatpush1.xpose.msra.mxu0 0.0
    %1275 = vmatprep.subr.mxu0 0.0
    %1276 = vmatpush1.xpose.msra.mxu0 0.0
    %1277 = vmatprep.subr.mxu0 0.0
    %1278 = vmatpush1.xpose.msra.mxu0 0.0
    %1279 = vmatprep.subr.mxu0 0.0
    %1280 = vmatpush1.xpose.msra.mxu0 0.0
    %1281 = vmatprep.subr.mxu0 0.0
    %1282 = vmatpush1.xpose.msra.mxu0 0.0
    %1283 = vmatprep.subr.mxu0 0.0
    %1284 = vmatpush1.xpose.msra.mxu0 0.0
    %1285 = vmatprep.subr.mxu0 0.0
    %1286 = vmatpush1.xpose.msra.mxu0 0.0
    %1287 = vmatprep.subr.mxu0 0.0
    %1288 = vmatpush1.xpose.msra.mxu0 0.0
    %1289 = vmatprep.subr.mxu0 0.0
    %1290 = vmatpush1.xpose.msra.mxu0 0.0
    %1291 = vmatprep.subr.mxu0 0.0
    %1292 = vmatpush1.xpose.msra.mxu0 0.0
    %1293 = vmatprep.subr.mxu0 0.0
    %1294 = vmatpush1.xpose.msra.mxu0 %v1259
    %1295 = vmatprep.subr.mxu0 0.0
    %1296 = vmatpush2.xpose.msra.mxu0 0.0
    %1297 = vmatprep.subr.mxu0 0.0
    %1298 = vmatpush2.xpose.msra.mxu0 0.0
    %1299 = vmatprep.subr.mxu0 0.0
    %1300 = vmatpush2.xpose.msra.mxu0 0.0
    %1301 = vmatprep.subr.mxu0 0.0
    %1302 = vmatpush2.xpose.msra.mxu0 0.0
    %1303 = vmatprep.subr.mxu0 0.0
    %1304 = vmatpush2.xpose.msra.mxu0 0.0
    %1305 = vmatprep.subr.mxu0 0.0
    %1306 = vmatpush2.xpose.msra.mxu0 0.0
    %1307 = vmatprep.subr.mxu0 0.0
    %1308 = vmatpush2.xpose.msra.mxu0 0.0
    %1309 = vmatprep.subr.mxu0 0.0
    %1310 = vmatpush2.xpose.msra.mxu0 0.0
    %1311 = vmatprep.subr.mxu0 0.0
    %1312 = vmatpush2.xpose.msra.mxu0 0.0
    %1313 = vmatprep.subr.mxu0 0.0
    %1314 = vmatpush2.xpose.msra.mxu0 0.0
    %1315 = vmatprep.subr.mxu0 0.0
    %1316 = vmatpush2.xpose.msra.mxu0 0.0
    %1317 = vmatprep.subr.mxu0 0.0
    %1318 = vmatpush2.xpose.msra.mxu0 0.0
    %1319 = vmatprep.subr.mxu0 0.0
    %1320 = vmatpush2.xpose.msra.mxu0 0.0
    %1321 = vmatprep.subr.mxu0 0.0
    %1322 = vmatpush2.xpose.msra.mxu0 0.0
    %1323 = vmatprep.subr.mxu0 0.0
    %1324 = vmatpush2.xpose.msra.mxu0 0.0
    %1325 = vmatprep.subr.mxu0 0.0
    %1326 = vmatpush2.xpose.msra.mxu0 0.0
    %1327 = vmatprep.mubr.f32.mxu0 0.0
    %1328 = vmatmul.mubr.f32.gmra.mxu0 %v196
    %v1329 = vpop.f32.mrf.mxu0
    %v1330 = vadd.f32 0.0, %v1329
    %v1331 = vpop.f32.mrf.mxu0
    %1332 = vdwg.mxu0
    %1333 = vmatprep.subr.mxu0 0.0
    %1334 = vmatpush1.xpose.msra.mxu0 0.0
    %1335 = vmatprep.subr.mxu0 0.0
    %1336 = vmatpush1.xpose.msra.mxu0 0.0
    %1337 = vmatprep.subr.mxu0 0.0
    %1338 = vmatpush1.xpose.msra.mxu0 0.0
    %1339 = vmatprep.subr.mxu0 0.0
    %1340 = vmatpush1.xpose.msra.mxu0 0.0
    %1341 = vmatprep.subr.mxu0 0.0
    %1342 = vmatpush1.xpose.msra.mxu0 0.0
    %1343 = vmatprep.subr.mxu0 0.0
    %1344 = vmatpush1.xpose.msra.mxu0 0.0
    %1345 = vmatprep.subr.mxu0 0.0
    %1346 = vmatpush1.xpose.msra.mxu0 0.0
    %1347 = vmatprep.subr.mxu0 0.0
    %1348 = vmatpush1.xpose.msra.mxu0 0.0
    %1349 = vmatprep.subr.mxu0 0.0
    %1350 = vmatpush1.xpose.msra.mxu0 0.0
    %1351 = vmatprep.subr.mxu0 0.0
    %1352 = vmatpush1.xpose.msra.mxu0 0.0
    %1353 = vmatprep.subr.mxu0 0.0
    %1354 = vmatpush1.xpose.msra.mxu0 0.0
    %1355 = vmatprep.subr.mxu0 0.0
    %1356 = vmatpush1.xpose.msra.mxu0 0.0
    %1357 = vmatprep.subr.mxu0 0.0
    %1358 = vmatpush1.xpose.msra.mxu0 0.0
    %1359 = vmatprep.subr.mxu0 0.0
    %1360 = vmatpush1.xpose.msra.mxu0 0.0
    %1361 = vmatprep.subr.mxu0 0.0
    %1362 = vmatpush1.xpose.msra.mxu0 0.0
    %1363 = vmatprep.subr.mxu0 0.0
    %1364 = vmatpush1.xpose.msra.mxu0 %v1260
    %1365 = vmatprep.subr.mxu0 0.0
    %1366 = vmatpush2.xpose.msra.mxu0 0.0
    %1367 = vmatprep.subr.mxu0 0.0
    %1368 = vmatpush2.xpose.msra.mxu0 0.0
    %1369 = vmatprep.subr.mxu0 0.0
    %1370 = vmatpush2.xpose.msra.mxu0 0.0
    %1371 = vmatprep.subr.mxu0 0.0
    %1372 = vmatpush2.xpose.msra.mxu0 0.0
    %1373 = vmatprep.subr.mxu0 0.0
    %1374 = vmatpush2.xpose.msra.mxu0 0.0
    %1375 = vmatprep.subr.mxu0 0.0
    %1376 = vmatpush2.xpose.msra.mxu0 0.0
    %1377 = vmatprep.subr.mxu0 0.0
    %1378 = vmatpush2.xpose.msra.mxu0 0.0
    %1379 = vmatprep.subr.mxu0 0.0
    %1380 = vmatpush2.xpose.msra.mxu0 0.0
    %1381 = vmatprep.subr.mxu0 0.0
    %1382 = vmatpush2.xpose.msra.mxu0 0.0
    %1383 = vmatprep.subr.mxu0 0.0
    %1384 = vmatpush2.xpose.msra.mxu0 0.0
    %1385 = vmatprep.subr.mxu0 0.0
    %1386 = vmatpush2.xpose.msra.mxu0 0.0
    %1387 = vmatprep.subr.mxu0 0.0
    %1388 = vmatpush2.xpose.msra.mxu0 0.0
    %1389 = vmatprep.subr.mxu0 0.0
    %1390 = vmatpush2.xpose.msra.mxu0 0.0
    %1391 = vmatprep.subr.mxu0 0.0
    %1392 = vmatpush2.xpose.msra.mxu0 0.0
    %1393 = vmatprep.subr.mxu0 0.0
    %1394 = vmatpush2.xpose.msra.mxu0 0.0
    %1395 = vmatprep.subr.mxu0 0.0
    %1396 = vmatpush2.xpose.msra.mxu0 0.0
    %1397 = vmatprep.mubr.f32.mxu0 0.0
    %1398 = vmatmul.mubr.f32.gmra.mxu0 %v202
    %v1399 = vpop.f32.mrf.mxu0
    %v1400 = vadd.f32 0.0, %v1399
    %v1401 = vpop.f32.mrf.mxu0
    %1402 = vdwg.mxu0
    %v1403 = vmul.f32 %v1330, 0.35355338
    %v1404 = vmul.f32 %v1400, 0.35355338
    %v1405 = vsel %vm438, %v1403, -1e+30
    %v1406 = vsel %vm438, %v1404, -1e+30
    %v1407 = vsel %vm441, %v1405, -inf
    %1408 = vmax.xlane.f32.xlu0 %v1407
    %v1409 = vpop.xlane.xlu0 %1408
    %v1410 = vsel %vm441, %v1406, -inf
    %1411 = vmax.xlane.f32.xlu0 %v1410
    %v1412 = vpop.xlane.xlu0 %1411
    %v1413 = vsub.f32 %v1405, %v1409
    %v1414 = vsub.f32 %v1406, %v1412
    %v1415 = vmul.f32 %v1413, 1.442695
    %v1416 = vpow.pop %v1415
    %v1417 = vmul.f32 %v1414, 1.442695
    %v1418 = vpow.pop %v1417
    %v1419 = vsel %vm441, %v1416, 0.0
    %1420 = vadd.xlane.f32.xlu0 %v1419
    %v1421 = vpop.xlane.xlu0 %1420
    %v1422 = vsel %vm441, %v1418, 0.0
    %1423 = vadd.xlane.f32.xlu0 %v1422
    %v1424 = vpop.xlane.xlu0 %1423
    %v1425 = vrcp.pop %v1421
    %v1426 = vrcp.pop %v1424
    %v1427 = vmul.f32 %v1416, %v1425
    %v1428 = vmul.f32 %v1418, %v1426
    %v1430 = vsel %vm441, %v1427, 0
    %1432 = vmatprep.subr.mxu0 0.0
    %1433 = vmatpush1.msra.mxu0 0.0
    %1434 = vmatprep.subr.mxu0 0.0
    %1435 = vmatpush1.msra.mxu0 0.0
    %1436 = vmatprep.subr.mxu0 0.0
    %1437 = vmatpush1.msra.mxu0 0.0
    %1438 = vmatprep.subr.mxu0 0.0
    %1439 = vmatpush1.msra.mxu0 0.0
    %1440 = vmatprep.subr.mxu0 0.0
    %1441 = vmatpush1.msra.mxu0 0.0
    %1442 = vmatprep.subr.mxu0 0.0
    %1443 = vmatpush1.msra.mxu0 0.0
    %1444 = vmatprep.subr.mxu0 0.0
    %1445 = vmatpush1.msra.mxu0 0.0
    %1446 = vmatprep.subr.mxu0 0.0
    %1447 = vmatpush1.msra.mxu0 0.0
    %1448 = vmatprep.subr.mxu0 0.0
    %1449 = vmatpush1.msra.mxu0 0.0
    %1450 = vmatprep.subr.mxu0 0.0
    %1451 = vmatpush1.msra.mxu0 0.0
    %1452 = vmatprep.subr.mxu0 0.0
    %1453 = vmatpush1.msra.mxu0 0.0
    %1454 = vmatprep.subr.mxu0 0.0
    %1455 = vmatpush1.msra.mxu0 0.0
    %1456 = vmatprep.subr.mxu0 0.0
    %1457 = vmatpush1.msra.mxu0 0.0
    %1458 = vmatprep.subr.mxu0 0.0
    %1459 = vmatpush1.msra.mxu0 0.0
    %1460 = vmatprep.subr.mxu0 0.0
    %1461 = vmatpush1.msra.mxu0 0.0
    %1462 = vmatprep.subr.mxu0 0.0
    %1463 = vmatpush1.msra.mxu0 %v1261
    %1464 = vmatprep.subr.mxu0 0.0
    %1465 = vmatpush2.msra.mxu0 0.0
    %1466 = vmatprep.subr.mxu0 0.0
    %1467 = vmatpush2.msra.mxu0 0.0
    %1468 = vmatprep.subr.mxu0 0.0
    %1469 = vmatpush2.msra.mxu0 0.0
    %1470 = vmatprep.subr.mxu0 0.0
    %1471 = vmatpush2.msra.mxu0 0.0
    %1472 = vmatprep.subr.mxu0 0.0
    %1473 = vmatpush2.msra.mxu0 0.0
    %1474 = vmatprep.subr.mxu0 0.0
    %1475 = vmatpush2.msra.mxu0 0.0
    %1476 = vmatprep.subr.mxu0 0.0
    %1477 = vmatpush2.msra.mxu0 0.0
    %1478 = vmatprep.subr.mxu0 0.0
    %1479 = vmatpush2.msra.mxu0 0.0
    %1480 = vmatprep.subr.mxu0 0.0
    %1481 = vmatpush2.msra.mxu0 0.0
    %1482 = vmatprep.subr.mxu0 0.0
    %1483 = vmatpush2.msra.mxu0 0.0
    %1484 = vmatprep.subr.mxu0 0.0
    %1485 = vmatpush2.msra.mxu0 0.0
    %1486 = vmatprep.subr.mxu0 0.0
    %1487 = vmatpush2.msra.mxu0 0.0
    %1488 = vmatprep.subr.mxu0 0.0
    %1489 = vmatpush2.msra.mxu0 0.0
    %1490 = vmatprep.subr.mxu0 0.0
    %1491 = vmatpush2.msra.mxu0 0.0
    %1492 = vmatprep.subr.mxu0 0.0
    %1493 = vmatpush2.msra.mxu0 0.0
    %1494 = vmatprep.subr.mxu0 0.0
    %1495 = vmatpush2.msra.mxu0 0.0
    %1496 = vmatprep.mubr.f32.mxu0 0.0
    %1497 = vmatmul.mubr.f32.gmra.mxu0 %v1430
    %v1498 = vpop.f32.mrf.mxu0
    %v1499 = vadd.f32 0.0, %v1498
    %v1500 = vpop.f32.mrf.mxu0
    %1501 = vdwg.mxu0
    %v1503 = vsel %vm441, %v1428, 0
    %1505 = vmatprep.subr.mxu0 0.0
    %1506 = vmatpush1.msra.mxu0 0.0
    %1507 = vmatprep.subr.mxu0 0.0
    %1508 = vmatpush1.msra.mxu0 0.0
    %1509 = vmatprep.subr.mxu0 0.0
    %1510 = vmatpush1.msra.mxu0 0.0
    %1511 = vmatprep.subr.mxu0 0.0
    %1512 = vmatpush1.msra.mxu0 0.0
    %1513 = vmatprep.subr.mxu0 0.0
    %1514 = vmatpush1.msra.mxu0 0.0
    %1515 = vmatprep.subr.mxu0 0.0
    %1516 = vmatpush1.msra.mxu0 0.0
    %1517 = vmatprep.subr.mxu0 0.0
    %1518 = vmatpush1.msra.mxu0 0.0
    %1519 = vmatprep.subr.mxu0 0.0
    %1520 = vmatpush1.msra.mxu0 0.0
    %1521 = vmatprep.subr.mxu0 0.0
    %1522 = vmatpush1.msra.mxu0 0.0
    %1523 = vmatprep.subr.mxu0 0.0
    %1524 = vmatpush1.msra.mxu0 0.0
    %1525 = vmatprep.subr.mxu0 0.0
    %1526 = vmatpush1.msra.mxu0 0.0
    %1527 = vmatprep.subr.mxu0 0.0
    %1528 = vmatpush1.msra.mxu0 0.0
    %1529 = vmatprep.subr.mxu0 0.0
    %1530 = vmatpush1.msra.mxu0 0.0
    %1531 = vmatprep.subr.mxu0 0.0
    %1532 = vmatpush1.msra.mxu0 0.0
    %1533 = vmatprep.subr.mxu0 0.0
    %1534 = vmatpush1.msra.mxu0 0.0
    %1535 = vmatprep.subr.mxu0 0.0
    %1536 = vmatpush1.msra.mxu0 %v1262
    %1537 = vmatprep.subr.mxu0 0.0
    %1538 = vmatpush2.msra.mxu0 0.0
    %1539 = vmatprep.subr.mxu0 0.0
    %1540 = vmatpush2.msra.mxu0 0.0
    %1541 = vmatprep.subr.mxu0 0.0
    %1542 = vmatpush2.msra.mxu0 0.0
    %1543 = vmatprep.subr.mxu0 0.0
    %1544 = vmatpush2.msra.mxu0 0.0
    %1545 = vmatprep.subr.mxu0 0.0
    %1546 = vmatpush2.msra.mxu0 0.0
    %1547 = vmatprep.subr.mxu0 0.0
    %1548 = vmatpush2.msra.mxu0 0.0
    %1549 = vmatprep.subr.mxu0 0.0
    %1550 = vmatpush2.msra.mxu0 0.0
    %1551 = vmatprep.subr.mxu0 0.0
    %1552 = vmatpush2.msra.mxu0 0.0
    %1553 = vmatprep.subr.mxu0 0.0
    %1554 = vmatpush2.msra.mxu0 0.0
    %1555 = vmatprep.subr.mxu0 0.0
    %1556 = vmatpush2.msra.mxu0 0.0
    %1557 = vmatprep.subr.mxu0 0.0
    %1558 = vmatpush2.msra.mxu0 0.0
    %1559 = vmatprep.subr.mxu0 0.0
    %1560 = vmatpush2.msra.mxu0 0.0
    %1561 = vmatprep.subr.mxu0 0.0
    %1562 = vmatpush2.msra.mxu0 0.0
    %1563 = vmatprep.subr.mxu0 0.0
    %1564 = vmatpush2.msra.mxu0 0.0
    %1565 = vmatprep.subr.mxu0 0.0
    %1566 = vmatpush2.msra.mxu0 0.0
    %1567 = vmatprep.subr.mxu0 0.0
    %1568 = vmatpush2.msra.mxu0 0.0
    %1569 = vmatprep.mubr.f32.mxu0 0.0
    %1570 = vmatmul.mubr.f32.gmra.mxu0 %v1503
    %v1571 = vpop.f32.mrf.mxu0
    %v1572 = vadd.f32 0.0, %v1571
    %v1573 = vpop.f32.mrf.mxu0
    %1574 = vdwg.mxu0
    %v1575 = vadd.f32 %v1252, %v1499
    %v1576 = vadd.f32 %v1253, %v1572
    %v1577 = vld [vmem:[#allocation7] sm:$0xff]
    %v1578 = vld [vmem:[#allocation7 + $0x8] sm:$0xff]
    %v1579 = vld [vmem:[#allocation7 + $0x10] sm:$0xff]
    %v1580 = vld [vmem:[#allocation7 + $0x18] sm:$0xff]
    %v1581 = vld [vmem:[#allocation7 + $0x20] sm:$0xff]
    %v1582 = vld [vmem:[#allocation7 + $0x28] sm:$0xff]
    %v1583 = vld [vmem:[#allocation7 + $0x30] sm:$0xff]
    %v1584 = vld [vmem:[#allocation7 + $0x38] sm:$0xff]
    %v1585 = vld [vmem:[#allocation7 + $0x40] sm:$0xff]
    %v1586 = vld [vmem:[#allocation7 + $0x48] sm:$0xff]
    %v1587 = vld [vmem:[#allocation7 + $0x50] sm:$0xff]
    %v1588 = vld [vmem:[#allocation7 + $0x58] sm:$0xff]
    %v1589 = vld [vmem:[#allocation7 + $0x60] sm:$0xff]
    %v1590 = vld [vmem:[#allocation7 + $0x68] sm:$0xff]
    %v1591 = vld [vmem:[#allocation7 + $0x70] sm:$0xff]
    %v1592 = vld [vmem:[#allocation7 + $0x78] sm:$0xff]
    %v1593 = vld [vmem:[%s4] sm:$0x1]
    %v1595 = vlaneseq
    %v1596 = vshrl.u32 %v1595, 7
    %v1597 = vsub.s32 0, %v1596
    %v1598 = vrot.slane %v1593, %v1597
    %1600 = vmatprep.subr.mxu0 0.0
    %1601 = vmatpush1.msra.mxu0 %v1592
    %1602 = vmatprep.subr.mxu0 0.0
    %1603 = vmatpush1.msra.mxu0 %v1591
    %1604 = vmatprep.subr.mxu0 0.0
    %1605 = vmatpush1.msra.mxu0 %v1590
    %1606 = vmatprep.subr.mxu0 0.0
    %1607 = vmatpush1.msra.mxu0 %v1589
    %1608 = vmatprep.subr.mxu0 0.0
    %1609 = vmatpush1.msra.mxu0 %v1588
    %1610 = vmatprep.subr.mxu0 0.0
    %1611 = vmatpush1.msra.mxu0 %v1587
    %1612 = vmatprep.subr.mxu0 0.0
    %1613 = vmatpush1.msra.mxu0 %v1586
    %1614 = vmatprep.subr.mxu0 0.0
    %1615 = vmatpush1.msra.mxu0 %v1585
    %1616 = vmatprep.subr.mxu0 0.0
    %1617 = vmatpush1.msra.mxu0 %v1584
    %1618 = vmatprep.subr.mxu0 0.0
    %1619 = vmatpush1.msra.mxu0 %v1583
    %1620 = vmatprep.subr.mxu0 0.0
    %1621 = vmatpush1.msra.mxu0 %v1582
    %1622 = vmatprep.subr.mxu0 0.0
    %1623 = vmatpush1.msra.mxu0 %v1581
    %1624 = vmatprep.subr.mxu0 0.0
    %1625 = vmatpush1.msra.mxu0 %v1580
    %1626 = vmatprep.subr.mxu0 0.0
    %1627 = vmatpush1.msra.mxu0 %v1579
    %1628 = vmatprep.subr.mxu0 0.0
    %1629 = vmatpush1.msra.mxu0 %v1578
    %1630 = vmatprep.subr.mxu0 0.0
    %1631 = vmatpush1.msra.mxu0 %v1577
    %1632 = vmatprep.subr.mxu0 0.0
    %1633 = vmatpush2.msra.mxu0 0.0
    %1634 = vmatprep.subr.mxu0 0.0
    %1635 = vmatpush2.msra.mxu0 0.0
    %1636 = vmatprep.subr.mxu0 0.0
    %1637 = vmatpush2.msra.mxu0 0.0
    %1638 = vmatprep.subr.mxu0 0.0
    %1639 = vmatpush2.msra.mxu0 0.0
    %1640 = vmatprep.subr.mxu0 0.0
    %1641 = vmatpush2.msra.mxu0 0.0
    %1642 = vmatprep.subr.mxu0 0.0
    %1643 = vmatpush2.msra.mxu0 0.0
    %1644 = vmatprep.subr.mxu0 0.0
    %1645 = vmatpush2.msra.mxu0 0.0
    %1646 = vmatprep.subr.mxu0 0.0
    %1647 = vmatpush2.msra.mxu0 0.0
    %1648 = vmatprep.subr.mxu0 0.0
    %1649 = vmatpush2.msra.mxu0 0.0
    %1650 = vmatprep.subr.mxu0 0.0
    %1651 = vmatpush2.msra.mxu0 0.0
    %1652 = vmatprep.subr.mxu0 0.0
    %1653 = vmatpush2.msra.mxu0 0.0
    %1654 = vmatprep.subr.mxu0 0.0
    %1655 = vmatpush2.msra.mxu0 0.0
    %1656 = vmatprep.subr.mxu0 0.0
    %1657 = vmatpush2.msra.mxu0 0.0
    %1658 = vmatprep.subr.mxu0 0.0
    %1659 = vmatpush2.msra.mxu0 0.0
    %1660 = vmatprep.subr.mxu0 0.0
    %1661 = vmatpush2.msra.mxu0 0.0
    %1662 = vmatprep.subr.mxu0 0.0
    %1663 = vmatpush2.msra.mxu0 0.0
    %1664 = vmatprep.mubr.f32.mxu0 0.0
    %1665 = vmatmul.mubr.f32.gmra.mxu0 %v1575
    %v1666 = vpop.f32.mrf.mxu0
    %v1667 = vadd.f32 %v1598, %v1666
    %v1668 = vpop.f32.mrf.mxu0
    %1669 = vmatprep.mubr.f32.mxu0 0.0
    %1670 = vmatmul.mubr.f32.gmra.mxu0 %v1576
    %v1671 = vpop.f32.mrf.mxu0
    %v1672 = vadd.f32 %v1598, %v1671
    %v1673 = vpop.f32.mrf.mxu0
    %1674 = vdwg.mxu0
    %1675 = vst [vmem:[#allocation8] sm:$0xff] %v1667
    %1676 = vst [vmem:[#allocation8 + $0x8] sm:$0xff] %v1672
    // Predicated region
    $region34: #{tpu_custom_call.1} parent=1 // pred_check
      _
    $region35: #{tpu_custom_call.1} parent=1 // pred_check_branch
      %1678 = sbr.rel (0) target = $region37
    $region36: #{tpu_custom_call.1} parent=1 // pred_region
      %s1680 = ssub.s32 256, 256
      %1681 = vsyncadd [#allocation4], %s1680
      %s1682 = sshll.u32 [#allocation8], 4
      %s1683 = int_to_ptr.vmem [resolvable:$true] %s1682
      %1688 = dma.vmem_to_hbm [thread:$0]  %s1683, 256, %s5, [#allocation4], 128, 128, 8
    $region37: #{tpu_custom_call.1} parent=1 // pred_fallthru
      _
    // Predicated region
    $region38: #{tpu_custom_call.1} parent=1 // pred_check
      _
    $region39: #{tpu_custom_call.1} parent=1 // pred_check_branch
      %1690 = sbr.rel (0) target = $region41
    $region40: #{tpu_custom_call.1} parent=1 // pred_region
      %1691 = dma.done [#allocation4], 256
    $region41: #{tpu_custom_call.1} parent=1 // pred_fallthru
      _
    %1692 = vsyncpa [#allocation3], 1
    %1693 = vsyncpa [#allocation6], 1
    %1694 = vsyncpa [#allocation4], 1

</llo_original>
